<compile_context>
chip_gen: v7x
topology: tpu7x:2x2x1
jax: 0.10.0
libtpu: 0.0.40
codegen_flags: <defaults>
</compile_context>

<pallas_src>
import jax
import jax.numpy as jnp
from jax.experimental import pallas as pl
from jax.experimental.pallas import tpu as pltpu


def _round_up(a, b):
    return (a + b - 1) // b * b


def _pad2(arr, rows, cols):
    pr, pc = rows - arr.shape[0], cols - arr.shape[1]
    if pr or pc:
        arr = jnp.pad(arr, ((0, pr), (0, pc)))
    return arr


def attn_net_kernel(x_ref, w1_ref, b1_ref, w2_ref, b2_ref, a_ref):
    # hidden = tanh(x @ W1^T + b1), accumulated in f32 on the MXU.
    h = jnp.dot(x_ref[...], w1_ref[...], preferred_element_type=jnp.float32)
    h = jnp.tanh(h + b1_ref[...])                           # (TN, D_pad) f32
    # A^T = W2 @ h^T  -> (C_pad, TN): lane-dense output tile.
    a = jax.lax.dot_general(
        w2_ref[...], h,
        dimension_numbers=(((1,), (1,)), ((), ())),
        preferred_element_type=jnp.float32)                  # (C_pad, TN)
    a_ref[...] = (a + b2_ref[...]).astype(a_ref.dtype)


def attn_net_forward(x, w1, b1, w2, b2, *, compute_dtype=None, tn=None,
                     out_dtype=jnp.float32):
    """x: (N, L); w1: (D, L); b1: (D,); w2: (C, D); b2: (C,). Returns (A, x)."""
    N, L = x.shape
    D = w1.shape[0]
    C = w2.shape[0]

    L_pad = _round_up(L, 128)
    D_pad = _round_up(D, 128)
    C_pad = _round_up(C, 8)

    in_dtype = jnp.dtype(compute_dtype) if compute_dtype is not None else jnp.dtype(x.dtype)
    itemsize = in_dtype.itemsize

    # Tile size along N: ~4 MiB per x buffer, multiple of 128, never larger than
    # the (128-rounded) problem.  Double-buffered, this stays well under v7x's
    # scoped VMEM while amortizing per-step overhead.
    if tn is None:
        tn = max(128, min(2048, (4 * 2**20) // max(1, L_pad * itemsize) // 128 * 128))
    TN = max(128, _round_up(min(tn, _round_up(N, 128)), 128))
    N_pad = _round_up(N, TN)

    # Layout glue (plain JAX): pad to aligned shapes, pre-transpose W1.
    x_p = _pad2(x.astype(in_dtype), N_pad, L_pad)                       # (N_pad, L_pad)
    w1_t = _pad2(w1.T.astype(in_dtype), L_pad, D_pad)                   # (L_pad, D_pad)
    b1_r = _pad2(b1.astype(jnp.float32).reshape(1, D), 1, D_pad)        # (1, D_pad)
    w2_p = _pad2(w2.astype(jnp.float32), C_pad, D_pad)                  # (C_pad, D_pad)
    b2_c = _pad2(b2.astype(jnp.float32).reshape(C, 1), C_pad, 1)        # (C_pad, 1)

    grid = (N_pad // TN,)

    # VMEM budget: 2x x-tile (double-buffer) + resident weights + 2x out-tile
    # + headroom for the (TN, D_pad) hidden intermediate.
    need = (2 * TN * L_pad * itemsize
            + L_pad * D_pad * itemsize + D_pad * 4 + C_pad * D_pad * 4 + C_pad * 4
            + 2 * C_pad * TN * 4
            + 2 * TN * D_pad * 4)
    vmem_limit = int(min(max(2 * need, 32 * 2**20), 48 * 2**20))

    cost = pl.CostEstimate(
        flops=2 * N_pad * L_pad * D_pad + 2 * N_pad * D_pad * C_pad,
        transcendentals=N_pad * D_pad,
        bytes_accessed=(N_pad * L_pad * itemsize + L_pad * D_pad * itemsize
                        + D_pad * 4 + C_pad * D_pad * 4 + C_pad * 4
                        + C_pad * N_pad * 4))

    a_t = pl.pallas_call(
        attn_net_kernel,
        out_shape=jax.ShapeDtypeStruct((C_pad, N_pad), out_dtype),
        grid_spec=pltpu.PrefetchScalarGridSpec(
            num_scalar_prefetch=0,
            grid=grid,
            in_specs=[
                pl.BlockSpec((TN, L_pad), lambda i: (i, 0)),      # x tile (streamed)
                pl.BlockSpec((L_pad, D_pad), lambda i: (0, 0)),   # W1^T (resident)
                pl.BlockSpec((1, D_pad), lambda i: (0, 0)),       # b1   (resident)
                pl.BlockSpec((C_pad, D_pad), lambda i: (0, 0)),   # W2   (resident)
                pl.BlockSpec((C_pad, 1), lambda i: (0, 0)),       # b2   (resident)
            ],
            out_specs=pl.BlockSpec((C_pad, TN), lambda i: (0, i)),  # lane-dense A^T
        ),
        compiler_params=pltpu.CompilerParams(
            dimension_semantics=("parallel",),
            vmem_limit_bytes=vmem_limit),
        cost_estimate=cost,
    )(x_p, w1_t, b1_r, w2_p, b2_c)

    a = a_t[:C, :N].T          # (N, C); trivial slice/transpose of the tiny output
    return a, x                # forward() returns (attention scores, original features)


def init_attn_net_params(key, L, D, n_classes):
    """Deterministic init mimicking nn.Linear defaults: U(-1/sqrt(fan_in), +1/sqrt(fan_in))."""
    k1, k2, k3, k4 = jax.random.split(key, 4)
    lim1 = 1.0 / jnp.sqrt(jnp.float32(L))
    lim2 = 1.0 / jnp.sqrt(jnp.float32(D))
    w1 = jax.random.uniform(k1, (D, L), jnp.float32, -lim1, lim1)
    b1 = jax.random.uniform(k2, (D,), jnp.float32, -lim1, lim1)
    w2 = jax.random.uniform(k3, (n_classes, D), jnp.float32, -lim2, lim2)
    b2 = jax.random.uniform(k4, (n_classes,), jnp.float32, -lim2, lim2)
    return w1, b1, w2, b2


if __name__ == "__main__":
    # Small bag, module-default feature dims: Attn_Net(L=1024, D=256, n_classes=1).
    # N=300 is deliberately not a multiple of the tile to exercise padding.
    N, L, D, n_classes = 300, 1024, 256, 1

    key = jax.random.PRNGKey(0)
    kx, kp = jax.random.split(key)
    x = jax.random.normal(kx, (N, L), jnp.float32)
    w1, b1, w2, b2 = init_attn_net_params(kp, L, D, n_classes)

    # f32 path; small tile (TN=128) to exercise a multi-step pipelined grid.
    a, x_out = attn_net_forward(x, w1, b1, w2, b2, tn=128)
    jax.block_until_ready((a, x_out))

    # Pure-JAX reference of the same math (high-precision matmuls).
    hp = jax.lax.Precision.HIGHEST
    ref = jnp.tanh(jnp.dot(x, w1.T, precision=hp) + b1)
    ref = jnp.dot(ref, w2.T, precision=hp) + b2

    assert a.shape == (N, n_classes)
    assert x_out.shape == (N, L)
    assert jnp.allclose(a, ref, atol=1e-4, rtol=1e-4)
    assert jnp.array_equal(x_out, x)

    # bf16-input path (bandwidth-optimized first matmul, f32 accumulation).
    a_bf16, _ = attn_net_forward(x, w1, b1, w2, b2, compute_dtype=jnp.bfloat16)
    jax.block_until_ready(a_bf16)
    assert a_bf16.shape == (N, n_classes)
    assert bool(jnp.all(jnp.isfinite(a_bf16)))
    assert jnp.allclose(a_bf16, ref, atol=1e-1, rtol=1e-1)

    print("KERNEL_OK")
</pallas_src>

<mosaic_0001>
module attributes {stable_mosaic.version = 11 : i64} {
  func.func @attn_net_kernel(%arg0: i32, %arg1: memref<128x1024xf32, #tpu.memory_space<vmem>>, %arg2: memref<1024x256xf32, #tpu.memory_space<vmem>>, %arg3: memref<1x256xf32, #tpu.memory_space<vmem>>, %arg4: memref<8x256xf32, #tpu.memory_space<vmem>>, %arg5: memref<8x1xf32, #tpu.memory_space<vmem>>, %arg6: memref<8x128xf32, #tpu.memory_space<vmem>>) attributes {dimension_semantics = [#tpu.dimension_semantics<parallel>], iteration_bounds = array<i64: 3>, scalar_prefetch = 0 : i64, scratch_operands = 0 : i64, tpu.core_type = #tpu.core_type<tc>, window_params = [{transform_indices = @transform_0, window_bounds = array<i64: 128, 1024>}, {pipeline_mode = #tpu.pipeline_mode<synchronous>, transform_indices = @transform_1, window_bounds = array<i64: 1024, 256>}, {pipeline_mode = #tpu.pipeline_mode<synchronous>, transform_indices = @transform_2, window_bounds = array<i64: 1, 256>}, {pipeline_mode = #tpu.pipeline_mode<synchronous>, transform_indices = @transform_3, window_bounds = array<i64: 8, 256>}, {pipeline_mode = #tpu.pipeline_mode<synchronous>, transform_indices = @transform_4, window_bounds = array<i64: 8, 1>}, {transform_indices = @transform_5, window_bounds = array<i64: 8, 128>}]} {
    %c0 = arith.constant 0 : index
    %c0_0 = arith.constant 0 : index
    %0 = vector.load %arg1[%c0, %c0_0] : memref<128x1024xf32, #tpu.memory_space<vmem>>, vector<128x1024xf32>
    %c0_1 = arith.constant 0 : index
    %c0_2 = arith.constant 0 : index
    %1 = vector.load %arg2[%c0_1, %c0_2] : memref<1024x256xf32, #tpu.memory_space<vmem>>, vector<1024x256xf32>
    %cst = arith.constant dense<0.000000e+00> : vector<128x256xf32>
    %2 = tpu.matmul %0, %1, %cst {dimension_numbers = #tpu.dot_dimension_numbers<[1], [0], [0], [1], [0, 0, 1, 1], [], []>} : vector<128x1024xf32>, vector<1024x256xf32>, vector<128x256xf32> -> vector<128x256xf32>
    %c0_3 = arith.constant 0 : index
    %c0_4 = arith.constant 0 : index
    %3 = vector.load %arg3[%c0_3, %c0_4] : memref<1x256xf32, #tpu.memory_space<vmem>>, vector<1x256xf32>
    %4 = vector.broadcast %3 : vector<1x256xf32> to vector<128x256xf32>
    %5 = arith.addf %2, %4 : vector<128x256xf32>
    %6 = math.tanh %5 : vector<128x256xf32>
    %c0_5 = arith.constant 0 : index
    %c0_6 = arith.constant 0 : index
    %7 = vector.load %arg4[%c0_5, %c0_6] : memref<8x256xf32, #tpu.memory_space<vmem>>, vector<8x256xf32>
    %cst_7 = arith.constant dense<0.000000e+00> : vector<8x128xf32>
    %8 = tpu.matmul %7, %6, %cst_7 {dimension_numbers = #tpu.dot_dimension_numbers<[1], [1], [0], [0], [0, 0, 1, 0], [], []>} : vector<8x256xf32>, vector<128x256xf32>, vector<8x128xf32> -> vector<8x128xf32>
    %c0_8 = arith.constant 0 : index
    %c0_9 = arith.constant 0 : index
    %9 = vector.load %arg5[%c0_8, %c0_9] : memref<8x1xf32, #tpu.memory_space<vmem>>, vector<8x1xf32>
    %10 = vector.broadcast %9 : vector<8x1xf32> to vector<8x128xf32>
    %11 = arith.addf %8, %10 : vector<8x128xf32>
    %c0_10 = arith.constant 0 : index
    %c0_11 = arith.constant 0 : index
    %12 = vector.load %arg6[%c0_10, %c0_11] : memref<8x128xf32, #tpu.memory_space<vmem>>, vector<8x128xf32>
    tpu.vector_store %arg6[%c0_10, %c0_11], %11 {strides = array<i32>} : memref<8x128xf32, #tpu.memory_space<vmem>>, vector<8x128xf32>,
    return
  }
  func.func @transform_0(%arg0: i32) -> (i32, i32) {
    %c0_i32 = arith.constant 0 : i32
    %c0_i32_0 = arith.constant 0 : i32
    return %arg0, %c0_i32 : i32, i32
  }
  func.func @transform_1(%arg0: i32) -> (i32, i32) {
    %c0_i32 = arith.constant 0 : i32
    %c0_i32_0 = arith.constant 0 : i32
    %c0_i32_1 = arith.constant 0 : i32
    return %c0_i32, %c0_i32_0 : i32, i32
  }
  func.func @transform_2(%arg0: i32) -> (i32, i32) {
    %c0_i32 = arith.constant 0 : i32
    %c0_i32_0 = arith.constant 0 : i32
    %c0_i32_1 = arith.constant 0 : i32
    return %c0_i32, %c0_i32_0 : i32, i32
  }
  func.func @transform_3(%arg0: i32) -> (i32, i32) {
    %c0_i32 = arith.constant 0 : i32
    %c0_i32_0 = arith.constant 0 : i32
    %c0_i32_1 = arith.constant 0 : i32
    return %c0_i32, %c0_i32_0 : i32, i32
  }
  func.func @transform_4(%arg0: i32) -> (i32, i32) {
    %c0_i32 = arith.constant 0 : i32
    %c0_i32_0 = arith.constant 0 : i32
    %c0_i32_1 = arith.constant 0 : i32
    return %c0_i32, %c0_i32_0 : i32, i32
  }
  func.func @transform_5(%arg0: i32) -> (i32, i32) {
    %c0_i32 = arith.constant 0 : i32
    %c0_i32_0 = arith.constant 0 : i32
    return %c0_i32, %arg0 : i32, i32
  }
}

</mosaic_0001>

<llo_original>
// kernel: tpu_custom_call.1
$region0: #{tpu_custom_call.1}
  #allocation0 [shape = 'u32[]', space=smem, size = 0x4, offset = 0x4, fixed_abs, tag = 'smem constant byte address 0x4 - core index']
  #allocation1 [shape = 'u32[144,128]{1,0:T(1,128)}', space=vmem, size = 0x12000, scoped, tag = 'internal scratch']
  %s0 = inlined_call_operand.hbm [shape: f32[384,1024], index: 0, kind: input, shape index: {}]
  %s1 = inlined_call_operand.hbm [shape: f32[1024,256], index: 1, kind: input, shape index: {}]
  %s2 = inlined_call_operand.hbm [shape: f32[1,256], index: 2, kind: input, shape index: {}]
  %s3 = inlined_call_operand.hbm [shape: f32[8,256], index: 3, kind: input, shape index: {}]
  %s4 = inlined_call_operand.vmem [shape: f32[8,1], index: 4, kind: input, shape index: {}]
  %s5 = inlined_call_operand.hbm [shape: f32[8,384], index: 5, kind: output, shape index: {}]
  %s6 = sld [smem:[#allocation0]]
  $region69: #{tpu_custom_call.1} parent=0
    _
  %s8 = ssub.s32 1, %s6
  %s9 = scalar_select 0, %s8, %s6
  $region1: #{tpu_custom_call.1} parent=0
    #allocation2 [shape = 'u8[1048576]{0}', space=vmem, size = 0x100000, scoped, tag = 'input window, operand 0']
    #allocation3 [shape = 's32[2]{0}', space=sflag, size = 0x8, scoped, tag = 'scoped memory for tpu_custom_call.1']
    #allocation4 [shape = 's32[2]{0}', space=sflag, size = 0x8, scoped, tag = 'scoped memory for tpu_custom_call.1']
    #allocation5 [shape = 'u8[1048576]{0}', space=vmem, size = 0x100000, scoped, tag = 'input window, operand 1, single buffered']
    #allocation6 [shape = 's32[1]{0}', space=sflag, size = 0x4, scoped, tag = 'scoped memory for tpu_custom_call.1']
    #allocation7 [shape = 'u8[1024]{0}', space=vmem, size = 0x400, scoped, tag = 'input window, operand 2, single buffered']
    #allocation8 [shape = 'u8[8192]{0}', space=vmem, size = 0x2000, scoped, tag = 'input window, operand 3, single buffered']
    #allocation9 [shape = 's32[1]{0}', space=sflag, size = 0x4, scoped, tag = 'scoped memory for tpu_custom_call.1']
    #allocation10 [shape = 'u8[8192]{0}', space=vmem, size = 0x2000, scoped, tag = 'output window, operand 0']
    %10 = vsyncpa [#allocation3], 0
    %s11 = scalar_lea.sflag [#allocation3], 1
    %12 = vsyncpa %s11, 0
    %13 = vsyncpa [#allocation6], 0
    %14 = vsyncpa [#allocation9], 0
    %15 = vsyncpa [#allocation4], 0
    %s16 = scalar_lea.sflag [#allocation4], 1
    %17 = vsyncpa %s16, 0
    loop: start=0, step=1, limit=5
    $region2: #{tpu_custom_call.1} parent=1 // loop_pre_header
      _
    $region3: #{tpu_custom_call.1} parent=1 // loop_header
      %s19 = sphi 0, %s23
      %p20 = scmp.ge.s32.totalorder %s19, 5
      %s29 = sphi 0, %s31
      %s32 = sphi 0, %s29
      %s33 = sphi 0, %s32
      %s49 = sphi 0, %s33
      %s53 = sphi 0, %s53
      %s55 = sphi 0, %s53
      %s56 = sphi 0, %s55
      %s70 = sphi 0, %s56
      %s74 = sphi 0, %s74
      %s76 = sphi 0, %s74
      %s77 = sphi 0, %s76
      %s91 = sphi 0, %s77
      %s95 = sphi 0, %s95
      %s97 = sphi 0, %s95
      %s98 = sphi 0, %s97
      %s112 = sphi 0, %s98
      %s116 = sphi 0, %s116
      %s118 = sphi 0, %s116
      %s119 = sphi 0, %s118
      %s133 = sphi 0, %s119
      %s139 = sphi 0, %s141
      %s142 = sphi 0, %s139
      %s143 = sphi 0, %s142
      %s159 = sphi 0, %s143
    $region4: #{tpu_custom_call.1} parent=1 // loop_header_branch
      %22 = sbr.rel (%p20) target = $region8
    $region5: #{tpu_custom_call.1} parent=1 // loop_body
      %s24 = ssub.s32 %s19, 1
      %s25 = ssub.s32 %s19, 2
      %s26 = sadd.s32 %s19, 1
      %s27 = ssub.s32 %s19, %s26
      %p28 = scmp.eq.s32.totalorder %s27, 0
      %s30 = sadd.s32 %s29, 1
      %s31 = scalar_select %p28, %s29, %s30
      %p34 = pneg %p28
      %p35 = scmp.eq.s32.totalorder %s19, 2
      %p36 = por %p34, %p35
      %p37 = scmp.ne.s32.totalorder %s29, %s32
      %p38 = scmp.eq.s32.totalorder %s19, 0
      %p39 = por %p37, %p38
      %p40 = scmp.ne.s32.totalorder %s29, %s32
      %p41 = scmp.eq.s32.totalorder %s24, 2
      %p42 = por %p40, %p41
      %p43 = scmp.ne.s32.totalorder %s32, %s33
      %p44 = scmp.eq.s32.totalorder %s24, 0
      %p45 = por %p43, %p44
      %p46 = scmp.ne.s32.totalorder %s32, %s33
      %p47 = scmp.eq.s32.totalorder %s25, 2
      %p48 = por %p46, %p47
      %p50 = scmp.ne.s32.totalorder %s33, %s49
      %p51 = scmp.eq.s32.totalorder %s25, 0
      %p52 = por %p50, %p51
      %s54 = sadd.s32 %s53, 1
      %p57 = scmp.eq.s32.totalorder %s19, 2
      %p58 = scmp.ne.s32.totalorder %s53, %s55
      %p59 = scmp.eq.s32.totalorder %s19, 0
      %p60 = por %p58, %p59
      %p61 = scmp.ne.s32.totalorder %s53, %s55
      %p62 = scmp.eq.s32.totalorder %s24, 2
      %p63 = por %p61, %p62
      %p64 = scmp.ne.s32.totalorder %s55, %s56
      %p65 = scmp.eq.s32.totalorder %s24, 0
      %p66 = por %p64, %p65
      %p67 = scmp.ne.s32.totalorder %s55, %s56
      %p68 = scmp.eq.s32.totalorder %s25, 2
      %p69 = por %p67, %p68
      %p71 = scmp.ne.s32.totalorder %s56, %s70
      %p72 = scmp.eq.s32.totalorder %s25, 0
      %p73 = por %p71, %p72
      %s75 = sadd.s32 %s74, 1
      %p78 = scmp.eq.s32.totalorder %s19, 2
      %p79 = scmp.ne.s32.totalorder %s74, %s76
      %p80 = scmp.eq.s32.totalorder %s19, 0
      %p81 = por %p79, %p80
      %p82 = scmp.ne.s32.totalorder %s74, %s76
      %p83 = scmp.eq.s32.totalorder %s24, 2
      %p84 = por %p82, %p83
      %p85 = scmp.ne.s32.totalorder %s76, %s77
      %p86 = scmp.eq.s32.totalorder %s24, 0
      %p87 = por %p85, %p86
      %p88 = scmp.ne.s32.totalorder %s76, %s77
      %p89 = scmp.eq.s32.totalorder %s25, 2
      %p90 = por %p88, %p89
      %p92 = scmp.ne.s32.totalorder %s77, %s91
      %p93 = scmp.eq.s32.totalorder %s25, 0
      %p94 = por %p92, %p93
      %s96 = sadd.s32 %s95, 1
      %p99 = scmp.eq.s32.totalorder %s19, 2
      %p100 = scmp.ne.s32.totalorder %s95, %s97
      %p101 = scmp.eq.s32.totalorder %s19, 0
      %p102 = por %p100, %p101
      %p103 = scmp.ne.s32.totalorder %s95, %s97
      %p104 = scmp.eq.s32.totalorder %s24, 2
      %p105 = por %p103, %p104
      %p106 = scmp.ne.s32.totalorder %s97, %s98
      %p107 = scmp.eq.s32.totalorder %s24, 0
      %p108 = por %p106, %p107
      %p109 = scmp.ne.s32.totalorder %s97, %s98
      %p110 = scmp.eq.s32.totalorder %s25, 2
      %p111 = por %p109, %p110
      %p113 = scmp.ne.s32.totalorder %s98, %s112
      %p114 = scmp.eq.s32.totalorder %s25, 0
      %p115 = por %p113, %p114
      %s117 = sadd.s32 %s116, 1
      %p120 = scmp.eq.s32.totalorder %s19, 2
      %p121 = scmp.ne.s32.totalorder %s116, %s118
      %p122 = scmp.eq.s32.totalorder %s19, 0
      %p123 = por %p121, %p122
      %p124 = scmp.ne.s32.totalorder %s116, %s118
      %p125 = scmp.eq.s32.totalorder %s24, 2
      %p126 = por %p124, %p125
      %p127 = scmp.ne.s32.totalorder %s118, %s119
      %p128 = scmp.eq.s32.totalorder %s24, 0
      %p129 = por %p127, %p128
      %p130 = scmp.ne.s32.totalorder %s118, %s119
      %p131 = scmp.eq.s32.totalorder %s25, 2
      %p132 = por %p130, %p131
      %p134 = scmp.ne.s32.totalorder %s119, %s133
      %p135 = scmp.eq.s32.totalorder %s25, 0
      %p136 = por %p134, %p135
      %s137 = ssub.s32 %s19, %s26
      %p138 = scmp.eq.s32.totalorder %s137, 0
      %s140 = sadd.s32 %s139, 1
      %s141 = scalar_select %p138, %s139, %s140
      %p144 = pneg %p138
      %p145 = scmp.eq.s32.totalorder %s19, 2
      %p146 = por %p144, %p145
      %p147 = scmp.ne.s32.totalorder %s139, %s142
      %p148 = scmp.eq.s32.totalorder %s19, 0
      %p149 = por %p147, %p148
      %p150 = scmp.ne.s32.totalorder %s139, %s142
      %p151 = scmp.eq.s32.totalorder %s24, 2
      %p152 = por %p150, %p151
      %p153 = scmp.ne.s32.totalorder %s142, %s143
      %p154 = scmp.eq.s32.totalorder %s24, 0
      %p155 = por %p153, %p154
      %p156 = scmp.ne.s32.totalorder %s142, %s143
      %p157 = scmp.eq.s32.totalorder %s25, 2
      %p158 = por %p156, %p157
      %p160 = scmp.ne.s32.totalorder %s143, %s159
      %p161 = scmp.eq.s32.totalorder %s25, 0
      %p162 = por %p160, %p161
      %p163 = scmp.le.s32.totalorder 1, %s19
      %p164 = scmp.lt.s32.totalorder %s19, 4
      %p165 = pnand %p163, %p164
      %p166 = pneg %p165
      // Predicated region
      $region9: #{tpu_custom_call.1} parent=5 // pred_check
        _
      $region10: #{tpu_custom_call.1} parent=5 // pred_check_branch
        %168 = sbr.rel (%p165) target = $region12
      $region11: #{tpu_custom_call.1} parent=5 // pred_region
        %s169 = ssub.s32 %s19, 1
        // Predicated region
        $region13: #{tpu_custom_call.1} parent=11 // pred_check
          %p170 = pneg %p66
        $region14: #{tpu_custom_call.1} parent=11 // pred_check_branch
          %172 = sbr.rel (%p170) target = $region16
        $region15: #{tpu_custom_call.1} parent=11 // pred_region
          %s174 = ssub.s32 32768, 32768
          %175 = vsyncadd [#allocation6], %s174
          %s176 = sshll.u32 [#allocation5], 4
          %s177 = int_to_ptr.vmem [resolvable:$true] %s176
          %182 = dma.hbm_to_vmem [thread:$0]  %s1, 32768, %s177, [#allocation6], 256, 256, 16
        $region16: #{tpu_custom_call.1} parent=11 // pred_fallthru
          _
        // Predicated region
        $region17: #{tpu_custom_call.1} parent=11 // pred_check
          %p183 = pneg %p87
        $region18: #{tpu_custom_call.1} parent=11 // pred_check_branch
          %185 = sbr.rel (%p183) target = $region20
        $region19: #{tpu_custom_call.1} parent=11 // pred_region
          %s187 = ssub.s32 32, 32
          %188 = vsyncadd [#allocation6], %s187
          %s190 = sshll.u32 [#allocation7], 4
          %s191 = int_to_ptr.vmem [resolvable:$true] %s190
          %193 = dma.hbm_to_vmem [thread:$0]  %s2, 32, %s191, [#allocation6]
        $region20: #{tpu_custom_call.1} parent=11 // pred_fallthru
          _
        // Predicated region
        $region21: #{tpu_custom_call.1} parent=11 // pred_check
          %p194 = pneg %p108
        $region22: #{tpu_custom_call.1} parent=11 // pred_check_branch
          %196 = sbr.rel (%p194) target = $region24
        $region23: #{tpu_custom_call.1} parent=11 // pred_region
          %s198 = ssub.s32 256, 256
          %199 = vsyncadd [#allocation9], %s198
          %s201 = sshll.u32 [#allocation8], 4
          %s202 = int_to_ptr.vmem [resolvable:$true] %s201
          %204 = dma.hbm_to_vmem [thread:$0]  %s3, 256, %s202, [#allocation9]
        $region24: #{tpu_custom_call.1} parent=11 // pred_fallthru
          _
        // Predicated region
        $region25: #{tpu_custom_call.1} parent=11 // pred_check
          %p205 = pneg %p129
        $region26: #{tpu_custom_call.1} parent=11 // pred_check_branch
          %207 = sbr.rel (%p205) target = $region28
        $region27: #{tpu_custom_call.1} parent=11 // pred_region
          _
        $region28: #{tpu_custom_call.1} parent=11 // pred_fallthru
          _
      $region12: #{tpu_custom_call.1} parent=5 // pred_fallthru
        _
      %p208 = scmp.lt.s32.totalorder %s19, 3
      // Predicated region
      $region29: #{tpu_custom_call.1} parent=5 // pred_check
        %p209 = pneg %p208
      $region30: #{tpu_custom_call.1} parent=5 // pred_check_branch
        %211 = sbr.rel (%p209) target = $region32
      $region31: #{tpu_custom_call.1} parent=5 // pred_region
        // Predicated region
        $region33: #{tpu_custom_call.1} parent=31 // pred_check
          %p212 = pneg %p39
        $region34: #{tpu_custom_call.1} parent=31 // pred_check_branch
          %214 = sbr.rel (%p212) target = $region36
        $region35: #{tpu_custom_call.1} parent=31 // pred_region
          %s215 = sand.u32 %s29, 1
          %s216 = scalar_lea.sflag [#allocation3], %s215
          %s217 = sand.u32 %s29, 1
          %s218 = smul.addr %s217, 1024
          %s219 = scalar_lea.vmem [#allocation2], %s218
          %s220 = smul.u32 16, %s19
          %s222 = ssub.s32 16384, 16384
          %223 = vsyncadd %s216, %s222
          %s224 = smul.addr %s220, 8
          %s225 = smul.addr %s224, 128
          %s226 = scalar_lea.hbm %s0, %s225
          %s227 = sshll.u32 %s219, 4
          %s228 = int_to_ptr.vmem [resolvable:$true] %s227
          %233 = dma.hbm_to_vmem [thread:$0]  %s226, 16384, %s228, %s216, 1024, 1024, 64
        $region36: #{tpu_custom_call.1} parent=31 // pred_fallthru
          _
      $region32: #{tpu_custom_call.1} parent=5 // pred_fallthru
        _
      %p234 = scmp.le.s32.totalorder 1, %s19
      %p235 = scmp.lt.s32.totalorder %s19, 4
      %p236 = pnand %p234, %p235
      %p237 = pneg %p236
      // Predicated region
      $region37: #{tpu_custom_call.1} parent=5 // pred_check
        _
      $region38: #{tpu_custom_call.1} parent=5 // pred_check_branch
        %239 = sbr.rel (%p236) target = $region40
      $region39: #{tpu_custom_call.1} parent=5 // pred_region
        %s240 = ssub.s32 %s19, 1
        %s241 = sand.u32 %s32, 1
        %s242 = scalar_lea.sflag [#allocation3], %s241
        %s243 = sand.u32 %s32, 1
        %s244 = smul.addr %s243, 1024
        %s245 = scalar_lea.vmem [#allocation2], %s244
        // Predicated region
        $region41: #{tpu_custom_call.1} parent=39 // pred_check
          %p246 = pneg %p45
        $region42: #{tpu_custom_call.1} parent=39 // pred_check_branch
          %248 = sbr.rel (%p246) target = $region44
        $region43: #{tpu_custom_call.1} parent=39 // pred_region
          %249 = dma.done %s242, 16384
        $region44: #{tpu_custom_call.1} parent=39 // pred_fallthru
          _
        // Predicated region
        $region45: #{tpu_custom_call.1} parent=39 // pred_check
          %p250 = pneg %p66
        $region46: #{tpu_custom_call.1} parent=39 // pred_check_branch
          %252 = sbr.rel (%p250) target = $region48
        $region47: #{tpu_custom_call.1} parent=39 // pred_region
          %253 = dma.done [#allocation6], 32768
        $region48: #{tpu_custom_call.1} parent=39 // pred_fallthru
          _
        // Predicated region
        $region49: #{tpu_custom_call.1} parent=39 // pred_check
          %p254 = pneg %p87
        $region50: #{tpu_custom_call.1} parent=39 // pred_check_branch
          %256 = sbr.rel (%p254) target = $region52
        $region51: #{tpu_custom_call.1} parent=39 // pred_region
          %257 = dma.done [#allocation6], 32
        $region52: #{tpu_custom_call.1} parent=39 // pred_fallthru
          _
        // Predicated region
        $region53: #{tpu_custom_call.1} parent=39 // pred_check
          %p258 = pneg %p108
        $region54: #{tpu_custom_call.1} parent=39 // pred_check_branch
          %260 = sbr.rel (%p258) target = $region56
        $region55: #{tpu_custom_call.1} parent=39 // pred_region
          %261 = dma.done [#allocation9], 256
        $region56: #{tpu_custom_call.1} parent=39 // pred_fallthru
          _
        %s262 = sand.u32 %s32, 1
        %s263 = scalar_lea.sflag [#allocation3], %s262
        %s264 = sand.u32 %s32, 1
        %s265 = smul.addr %s264, 1024
        %s266 = scalar_lea.vmem [#allocation2], %s265
        %p267 = pneg %p45
        %p268 = pneg %p42
        %p269 = pneg %p66
        %p270 = pneg %p63
        %p271 = pneg %p87
        %p272 = pneg %p84
        %p273 = pneg %p108
        %p274 = pneg %p105
        %p275 = pneg %p129
        %p276 = pneg %p126
        %p277 = pneg %p155
        %p278 = pneg %p152
        %s279 = sand.u32 %s142, 1
        %s280 = scalar_lea.sflag [#allocation4], %s279
        %s281 = sand.u32 %s142, 1
        %s282 = smul.addr %s281, 8
        %s283 = scalar_lea.vmem [#allocation10], %s282
        %s284 = smul.u32 16, %s24
        %v285 = vld [vmem:[%s245] sm:$0xff]
        %v286 = vld [vmem:[%s245 + $0x8] sm:$0xff]
        %v287 = vld [vmem:[%s245 + $0x10] sm:$0xff]
        %v288 = vld [vmem:[%s245 + $0x18] sm:$0xff]
        %v289 = vld [vmem:[%s245 + $0x20] sm:$0xff]
        %v290 = vld [vmem:[%s245 + $0x28] sm:$0xff]
        %v291 = vld [vmem:[%s245 + $0x30] sm:$0xff]
        %v292 = vld [vmem:[%s245 + $0x38] sm:$0xff]
        %v293 = vld [vmem:[%s245 + $0x40] sm:$0xff]
        %v294 = vld [vmem:[%s245 + $0x48] sm:$0xff]
        %v295 = vld [vmem:[%s245 + $0x50] sm:$0xff]
        %v296 = vld [vmem:[%s245 + $0x58] sm:$0xff]
        %v297 = vld [vmem:[%s245 + $0x60] sm:$0xff]
        %v298 = vld [vmem:[%s245 + $0x68] sm:$0xff]
        %v299 = vld [vmem:[%s245 + $0x70] sm:$0xff]
        %v300 = vld [vmem:[%s245 + $0x78] sm:$0xff]
        %v301 = vld [vmem:[%s245 + $0x80] sm:$0xff]
        %v302 = vld [vmem:[%s245 + $0x88] sm:$0xff]
        %v303 = vld [vmem:[%s245 + $0x90] sm:$0xff]
        %v304 = vld [vmem:[%s245 + $0x98] sm:$0xff]
        %v305 = vld [vmem:[%s245 + $0xa0] sm:$0xff]
        %v306 = vld [vmem:[%s245 + $0xa8] sm:$0xff]
        %v307 = vld [vmem:[%s245 + $0xb0] sm:$0xff]
        %v308 = vld [vmem:[%s245 + $0xb8] sm:$0xff]
        %v309 = vld [vmem:[%s245 + $0xc0] sm:$0xff]
        %v310 = vld [vmem:[%s245 + $0xc8] sm:$0xff]
        %v311 = vld [vmem:[%s245 + $0xd0] sm:$0xff]
        %v312 = vld [vmem:[%s245 + $0xd8] sm:$0xff]
        %v313 = vld [vmem:[%s245 + $0xe0] sm:$0xff]
        %v314 = vld [vmem:[%s245 + $0xe8] sm:$0xff]
        %v315 = vld [vmem:[%s245 + $0xf0] sm:$0xff]
        %v316 = vld [vmem:[%s245 + $0xf8] sm:$0xff]
        %v317 = vld [vmem:[%s245 + $0x100] sm:$0xff]
        %v318 = vld [vmem:[%s245 + $0x108] sm:$0xff]
        %v319 = vld [vmem:[%s245 + $0x110] sm:$0xff]
        %v320 = vld [vmem:[%s245 + $0x118] sm:$0xff]
        %v321 = vld [vmem:[%s245 + $0x120] sm:$0xff]
        %v322 = vld [vmem:[%s245 + $0x128] sm:$0xff]
        %v323 = vld [vmem:[%s245 + $0x130] sm:$0xff]
        %v324 = vld [vmem:[%s245 + $0x138] sm:$0xff]
        %v325 = vld [vmem:[%s245 + $0x140] sm:$0xff]
        %v326 = vld [vmem:[%s245 + $0x148] sm:$0xff]
        %v327 = vld [vmem:[%s245 + $0x150] sm:$0xff]
        %v328 = vld [vmem:[%s245 + $0x158] sm:$0xff]
        %v329 = vld [vmem:[%s245 + $0x160] sm:$0xff]
        %v330 = vld [vmem:[%s245 + $0x168] sm:$0xff]
        %v331 = vld [vmem:[%s245 + $0x170] sm:$0xff]
        %v332 = vld [vmem:[%s245 + $0x178] sm:$0xff]
        %v333 = vld [vmem:[%s245 + $0x180] sm:$0xff]
        %v334 = vld [vmem:[%s245 + $0x188] sm:$0xff]
        %v335 = vld [vmem:[%s245 + $0x190] sm:$0xff]
        %v336 = vld [vmem:[%s245 + $0x198] sm:$0xff]
        %v337 = vld [vmem:[%s245 + $0x1a0] sm:$0xff]
        %v338 = vld [vmem:[%s245 + $0x1a8] sm:$0xff]
        %v339 = vld [vmem:[%s245 + $0x1b0] sm:$0xff]
        %v340 = vld [vmem:[%s245 + $0x1b8] sm:$0xff]
        %v341 = vld [vmem:[%s245 + $0x1c0] sm:$0xff]
        %v342 = vld [vmem:[%s245 + $0x1c8] sm:$0xff]
        %v343 = vld [vmem:[%s245 + $0x1d0] sm:$0xff]
        %v344 = vld [vmem:[%s245 + $0x1d8] sm:$0xff]
        %v345 = vld [vmem:[%s245 + $0x1e0] sm:$0xff]
        %v346 = vld [vmem:[%s245 + $0x1e8] sm:$0xff]
        %v347 = vld [vmem:[%s245 + $0x1f0] sm:$0xff]
        %v348 = vld [vmem:[%s245 + $0x1f8] sm:$0xff]
        %v349 = vld [vmem:[%s245 + $0x200] sm:$0xff]
        %v350 = vld [vmem:[%s245 + $0x208] sm:$0xff]
        %v351 = vld [vmem:[%s245 + $0x210] sm:$0xff]
        %v352 = vld [vmem:[%s245 + $0x218] sm:$0xff]
        %v353 = vld [vmem:[%s245 + $0x220] sm:$0xff]
        %v354 = vld [vmem:[%s245 + $0x228] sm:$0xff]
        %v355 = vld [vmem:[%s245 + $0x230] sm:$0xff]
        %v356 = vld [vmem:[%s245 + $0x238] sm:$0xff]
        %v357 = vld [vmem:[%s245 + $0x240] sm:$0xff]
        %v358 = vld [vmem:[%s245 + $0x248] sm:$0xff]
        %v359 = vld [vmem:[%s245 + $0x250] sm:$0xff]
        %v360 = vld [vmem:[%s245 + $0x258] sm:$0xff]
        %v361 = vld [vmem:[%s245 + $0x260] sm:$0xff]
        %v362 = vld [vmem:[%s245 + $0x268] sm:$0xff]
        %v363 = vld [vmem:[%s245 + $0x270] sm:$0xff]
        %v364 = vld [vmem:[%s245 + $0x278] sm:$0xff]
        %v365 = vld [vmem:[%s245 + $0x280] sm:$0xff]
        %v366 = vld [vmem:[%s245 + $0x288] sm:$0xff]
        %v367 = vld [vmem:[%s245 + $0x290] sm:$0xff]
        %v368 = vld [vmem:[%s245 + $0x298] sm:$0xff]
        %v369 = vld [vmem:[%s245 + $0x2a0] sm:$0xff]
        %v370 = vld [vmem:[%s245 + $0x2a8] sm:$0xff]
        %v371 = vld [vmem:[%s245 + $0x2b0] sm:$0xff]
        %v372 = vld [vmem:[%s245 + $0x2b8] sm:$0xff]
        %v373 = vld [vmem:[%s245 + $0x2c0] sm:$0xff]
        %v374 = vld [vmem:[%s245 + $0x2c8] sm:$0xff]
        %v375 = vld [vmem:[%s245 + $0x2d0] sm:$0xff]
        %v376 = vld [vmem:[%s245 + $0x2d8] sm:$0xff]
        %v377 = vld [vmem:[%s245 + $0x2e0] sm:$0xff]
        %v378 = vld [vmem:[%s245 + $0x2e8] sm:$0xff]
        %v379 = vld [vmem:[%s245 + $0x2f0] sm:$0xff]
        %v380 = vld [vmem:[%s245 + $0x2f8] sm:$0xff]
        %v381 = vld [vmem:[%s245 + $0x300] sm:$0xff]
        %v382 = vld [vmem:[%s245 + $0x308] sm:$0xff]
        %v383 = vld [vmem:[%s245 + $0x310] sm:$0xff]
        %v384 = vld [vmem:[%s245 + $0x318] sm:$0xff]
        %v385 = vld [vmem:[%s245 + $0x320] sm:$0xff]
        %v386 = vld [vmem:[%s245 + $0x328] sm:$0xff]
        %v387 = vld [vmem:[%s245 + $0x330] sm:$0xff]
        %v388 = vld [vmem:[%s245 + $0x338] sm:$0xff]
        %v389 = vld [vmem:[%s245 + $0x340] sm:$0xff]
        %v390 = vld [vmem:[%s245 + $0x348] sm:$0xff]
        %v391 = vld [vmem:[%s245 + $0x350] sm:$0xff]
        %v392 = vld [vmem:[%s245 + $0x358] sm:$0xff]
        %v393 = vld [vmem:[%s245 + $0x360] sm:$0xff]
        %v394 = vld [vmem:[%s245 + $0x368] sm:$0xff]
        %v395 = vld [vmem:[%s245 + $0x370] sm:$0xff]
        %v396 = vld [vmem:[%s245 + $0x378] sm:$0xff]
        %v397 = vld [vmem:[%s245 + $0x380] sm:$0xff]
        %v398 = vld [vmem:[%s245 + $0x388] sm:$0xff]
        %v399 = vld [vmem:[%s245 + $0x390] sm:$0xff]
        %v400 = vld [vmem:[%s245 + $0x398] sm:$0xff]
        %v401 = vld [vmem:[%s245 + $0x3a0] sm:$0xff]
        %v402 = vld [vmem:[%s245 + $0x3a8] sm:$0xff]
        %v403 = vld [vmem:[%s245 + $0x3b0] sm:$0xff]
        %v404 = vld [vmem:[%s245 + $0x3b8] sm:$0xff]
        %v405 = vld [vmem:[%s245 + $0x3c0] sm:$0xff]
        %v406 = vld [vmem:[%s245 + $0x3c8] sm:$0xff]
        %v407 = vld [vmem:[%s245 + $0x3d0] sm:$0xff]
        %v408 = vld [vmem:[%s245 + $0x3d8] sm:$0xff]
        %v409 = vld [vmem:[%s245 + $0x3e0] sm:$0xff]
        %v410 = vld [vmem:[%s245 + $0x3e8] sm:$0xff]
        %v411 = vld [vmem:[%s245 + $0x3f0] sm:$0xff]
        %v412 = vld [vmem:[%s245 + $0x3f8] sm:$0xff]
        %v413 = vld [vmem:[#allocation5] sm:$0xff]
        %v414 = vld [vmem:[#allocation5 + $0x8] sm:$0xff]
        %v415 = vld [vmem:[#allocation5 + $0x10] sm:$0xff]
        %v416 = vld [vmem:[#allocation5 + $0x18] sm:$0xff]
        %v417 = vld [vmem:[#allocation5 + $0x20] sm:$0xff]
        %v418 = vld [vmem:[#allocation5 + $0x28] sm:$0xff]
        %v419 = vld [vmem:[#allocation5 + $0x30] sm:$0xff]
        %v420 = vld [vmem:[#allocation5 + $0x38] sm:$0xff]
        %v421 = vld [vmem:[#allocation5 + $0x40] sm:$0xff]
        %v422 = vld [vmem:[#allocation5 + $0x48] sm:$0xff]
        %v423 = vld [vmem:[#allocation5 + $0x50] sm:$0xff]
        %v424 = vld [vmem:[#allocation5 + $0x58] sm:$0xff]
        %v425 = vld [vmem:[#allocation5 + $0x60] sm:$0xff]
        %v426 = vld [vmem:[#allocation5 + $0x68] sm:$0xff]
        %v427 = vld [vmem:[#allocation5 + $0x70] sm:$0xff]
        %v428 = vld [vmem:[#allocation5 + $0x78] sm:$0xff]
        %v429 = vld [vmem:[#allocation5 + $0x80] sm:$0xff]
        %v430 = vld [vmem:[#allocation5 + $0x88] sm:$0xff]
        %v431 = vld [vmem:[#allocation5 + $0x90] sm:$0xff]
        %v432 = vld [vmem:[#allocation5 + $0x98] sm:$0xff]
        %v433 = vld [vmem:[#allocation5 + $0xa0] sm:$0xff]
        %v434 = vld [vmem:[#allocation5 + $0xa8] sm:$0xff]
        %v435 = vld [vmem:[#allocation5 + $0xb0] sm:$0xff]
        %v436 = vld [vmem:[#allocation5 + $0xb8] sm:$0xff]
        %v437 = vld [vmem:[#allocation5 + $0xc0] sm:$0xff]
        %v438 = vld [vmem:[#allocation5 + $0xc8] sm:$0xff]
        %v439 = vld [vmem:[#allocation5 + $0xd0] sm:$0xff]
        %v440 = vld [vmem:[#allocation5 + $0xd8] sm:$0xff]
        %v441 = vld [vmem:[#allocation5 + $0xe0] sm:$0xff]
        %v442 = vld [vmem:[#allocation5 + $0xe8] sm:$0xff]
        %v443 = vld [vmem:[#allocation5 + $0xf0] sm:$0xff]
        %v444 = vld [vmem:[#allocation5 + $0xf8] sm:$0xff]
        %v445 = vld [vmem:[#allocation5 + $0x100] sm:$0xff]
        %v446 = vld [vmem:[#allocation5 + $0x108] sm:$0xff]
        %v447 = vld [vmem:[#allocation5 + $0x110] sm:$0xff]
        %v448 = vld [vmem:[#allocation5 + $0x118] sm:$0xff]
        %v449 = vld [vmem:[#allocation5 + $0x120] sm:$0xff]
        %v450 = vld [vmem:[#allocation5 + $0x128] sm:$0xff]
        %v451 = vld [vmem:[#allocation5 + $0x130] sm:$0xff]
        %v452 = vld [vmem:[#allocation5 + $0x138] sm:$0xff]
        %v453 = vld [vmem:[#allocation5 + $0x140] sm:$0xff]
        %v454 = vld [vmem:[#allocation5 + $0x148] sm:$0xff]
        %v455 = vld [vmem:[#allocation5 + $0x150] sm:$0xff]
        %v456 = vld [vmem:[#allocation5 + $0x158] sm:$0xff]
        %v457 = vld [vmem:[#allocation5 + $0x160] sm:$0xff]
        %v458 = vld [vmem:[#allocation5 + $0x168] sm:$0xff]
        %v459 = vld [vmem:[#allocation5 + $0x170] sm:$0xff]
        %v460 = vld [vmem:[#allocation5 + $0x178] sm:$0xff]
        %v461 = vld [vmem:[#allocation5 + $0x180] sm:$0xff]
        %v462 = vld [vmem:[#allocation5 + $0x188] sm:$0xff]
        %v463 = vld [vmem:[#allocation5 + $0x190] sm:$0xff]
        %v464 = vld [vmem:[#allocation5 + $0x198] sm:$0xff]
        %v465 = vld [vmem:[#allocation5 + $0x1a0] sm:$0xff]
        %v466 = vld [vmem:[#allocation5 + $0x1a8] sm:$0xff]
        %v467 = vld [vmem:[#allocation5 + $0x1b0] sm:$0xff]
        %v468 = vld [vmem:[#allocation5 + $0x1b8] sm:$0xff]
        %v469 = vld [vmem:[#allocation5 + $0x1c0] sm:$0xff]
        %v470 = vld [vmem:[#allocation5 + $0x1c8] sm:$0xff]
        %v471 = vld [vmem:[#allocation5 + $0x1d0] sm:$0xff]
        %v472 = vld [vmem:[#allocation5 + $0x1d8] sm:$0xff]
        %v473 = vld [vmem:[#allocation5 + $0x1e0] sm:$0xff]
        %v474 = vld [vmem:[#allocation5 + $0x1e8] sm:$0xff]
        %v475 = vld [vmem:[#allocation5 + $0x1f0] sm:$0xff]
        %v476 = vld [vmem:[#allocation5 + $0x1f8] sm:$0xff]
        %v477 = vld [vmem:[#allocation5 + $0x200] sm:$0xff]
        %v478 = vld [vmem:[#allocation5 + $0x208] sm:$0xff]
        %v479 = vld [vmem:[#allocation5 + $0x210] sm:$0xff]
        %v480 = vld [vmem:[#allocation5 + $0x218] sm:$0xff]
        %v481 = vld [vmem:[#allocation5 + $0x220] sm:$0xff]
        %v482 = vld [vmem:[#allocation5 + $0x228] sm:$0xff]
        %v483 = vld [vmem:[#allocation5 + $0x230] sm:$0xff]
        %v484 = vld [vmem:[#allocation5 + $0x238] sm:$0xff]
        %v485 = vld [vmem:[#allocation5 + $0x240] sm:$0xff]
        %v486 = vld [vmem:[#allocation5 + $0x248] sm:$0xff]
        %v487 = vld [vmem:[#allocation5 + $0x250] sm:$0xff]
        %v488 = vld [vmem:[#allocation5 + $0x258] sm:$0xff]
        %v489 = vld [vmem:[#allocation5 + $0x260] sm:$0xff]
        %v490 = vld [vmem:[#allocation5 + $0x268] sm:$0xff]
        %v491 = vld [vmem:[#allocation5 + $0x270] sm:$0xff]
        %v492 = vld [vmem:[#allocation5 + $0x278] sm:$0xff]
        %v493 = vld [vmem:[#allocation5 + $0x280] sm:$0xff]
        %v494 = vld [vmem:[#allocation5 + $0x288] sm:$0xff]
        %v495 = vld [vmem:[#allocation5 + $0x290] sm:$0xff]
        %v496 = vld [vmem:[#allocation5 + $0x298] sm:$0xff]
        %v497 = vld [vmem:[#allocation5 + $0x2a0] sm:$0xff]
        %v498 = vld [vmem:[#allocation5 + $0x2a8] sm:$0xff]
        %v499 = vld [vmem:[#allocation5 + $0x2b0] sm:$0xff]
        %v500 = vld [vmem:[#allocation5 + $0x2b8] sm:$0xff]
        %v501 = vld [vmem:[#allocation5 + $0x2c0] sm:$0xff]
        %v502 = vld [vmem:[#allocation5 + $0x2c8] sm:$0xff]
        %v503 = vld [vmem:[#allocation5 + $0x2d0] sm:$0xff]
        %v504 = vld [vmem:[#allocation5 + $0x2d8] sm:$0xff]
        %v505 = vld [vmem:[#allocation5 + $0x2e0] sm:$0xff]
        %v506 = vld [vmem:[#allocation5 + $0x2e8] sm:$0xff]
        %v507 = vld [vmem:[#allocation5 + $0x2f0] sm:$0xff]
        %v508 = vld [vmem:[#allocation5 + $0x2f8] sm:$0xff]
        %v509 = vld [vmem:[#allocation5 + $0x300] sm:$0xff]
        %v510 = vld [vmem:[#allocation5 + $0x308] sm:$0xff]
        %v511 = vld [vmem:[#allocation5 + $0x310] sm:$0xff]
        %v512 = vld [vmem:[#allocation5 + $0x318] sm:$0xff]
        %v513 = vld [vmem:[#allocation5 + $0x320] sm:$0xff]
        %v514 = vld [vmem:[#allocation5 + $0x328] sm:$0xff]
        %v515 = vld [vmem:[#allocation5 + $0x330] sm:$0xff]
        %v516 = vld [vmem:[#allocation5 + $0x338] sm:$0xff]
        %v517 = vld [vmem:[#allocation5 + $0x340] sm:$0xff]
        %v518 = vld [vmem:[#allocation5 + $0x348] sm:$0xff]
        %v519 = vld [vmem:[#allocation5 + $0x350] sm:$0xff]
        %v520 = vld [vmem:[#allocation5 + $0x358] sm:$0xff]
        %v521 = vld [vmem:[#allocation5 + $0x360] sm:$0xff]
        %v522 = vld [vmem:[#allocation5 + $0x368] sm:$0xff]
        %v523 = vld [vmem:[#allocation5 + $0x370] sm:$0xff]
        %v524 = vld [vmem:[#allocation5 + $0x378] sm:$0xff]
        %v525 = vld [vmem:[#allocation5 + $0x380] sm:$0xff]
        %v526 = vld [vmem:[#allocation5 + $0x388] sm:$0xff]
        %v527 = vld [vmem:[#allocation5 + $0x390] sm:$0xff]
        %v528 = vld [vmem:[#allocation5 + $0x398] sm:$0xff]
        %v529 = vld [vmem:[#allocation5 + $0x3a0] sm:$0xff]
        %v530 = vld [vmem:[#allocation5 + $0x3a8] sm:$0xff]
        %v531 = vld [vmem:[#allocation5 + $0x3b0] sm:$0xff]
        %v532 = vld [vmem:[#allocation5 + $0x3b8] sm:$0xff]
        %v533 = vld [vmem:[#allocation5 + $0x3c0] sm:$0xff]
        %v534 = vld [vmem:[#allocation5 + $0x3c8] sm:$0xff]
        %v535 = vld [vmem:[#allocation5 + $0x3d0] sm:$0xff]
        %v536 = vld [vmem:[#allocation5 + $0x3d8] sm:$0xff]
        %v537 = vld [vmem:[#allocation5 + $0x3e0] sm:$0xff]
        %v538 = vld [vmem:[#allocation5 + $0x3e8] sm:$0xff]
        %v539 = vld [vmem:[#allocation5 + $0x3f0] sm:$0xff]
        %v540 = vld [vmem:[#allocation5 + $0x3f8] sm:$0xff]
        %v541 = vld [vmem:[#allocation5 + $0x400] sm:$0xff]
        %v542 = vld [vmem:[#allocation5 + $0x408] sm:$0xff]
        %v543 = vld [vmem:[#allocation5 + $0x410] sm:$0xff]
        %v544 = vld [vmem:[#allocation5 + $0x418] sm:$0xff]
        %v545 = vld [vmem:[#allocation5 + $0x420] sm:$0xff]
        %v546 = vld [vmem:[#allocation5 + $0x428] sm:$0xff]
        %v547 = vld [vmem:[#allocation5 + $0x430] sm:$0xff]
        %v548 = vld [vmem:[#allocation5 + $0x438] sm:$0xff]
        %v549 = vld [vmem:[#allocation5 + $0x440] sm:$0xff]
        %v550 = vld [vmem:[#allocation5 + $0x448] sm:$0xff]
        %v551 = vld [vmem:[#allocation5 + $0x450] sm:$0xff]
        %v552 = vld [vmem:[#allocation5 + $0x458] sm:$0xff]
        %v553 = vld [vmem:[#allocation5 + $0x460] sm:$0xff]
        %v554 = vld [vmem:[#allocation5 + $0x468] sm:$0xff]
        %v555 = vld [vmem:[#allocation5 + $0x470] sm:$0xff]
        %v556 = vld [vmem:[#allocation5 + $0x478] sm:$0xff]
        %v557 = vld [vmem:[#allocation5 + $0x480] sm:$0xff]
        %v558 = vld [vmem:[#allocation5 + $0x488] sm:$0xff]
        %v559 = vld [vmem:[#allocation5 + $0x490] sm:$0xff]
        %v560 = vld [vmem:[#allocation5 + $0x498] sm:$0xff]
        %v561 = vld [vmem:[#allocation5 + $0x4a0] sm:$0xff]
        %v562 = vld [vmem:[#allocation5 + $0x4a8] sm:$0xff]
        %v563 = vld [vmem:[#allocation5 + $0x4b0] sm:$0xff]
        %v564 = vld [vmem:[#allocation5 + $0x4b8] sm:$0xff]
        %v565 = vld [vmem:[#allocation5 + $0x4c0] sm:$0xff]
        %v566 = vld [vmem:[#allocation5 + $0x4c8] sm:$0xff]
        %v567 = vld [vmem:[#allocation5 + $0x4d0] sm:$0xff]
        %v568 = vld [vmem:[#allocation5 + $0x4d8] sm:$0xff]
        %v569 = vld [vmem:[#allocation5 + $0x4e0] sm:$0xff]
        %v570 = vld [vmem:[#allocation5 + $0x4e8] sm:$0xff]
        %v571 = vld [vmem:[#allocation5 + $0x4f0] sm:$0xff]
        %v572 = vld [vmem:[#allocation5 + $0x4f8] sm:$0xff]
        %v573 = vld [vmem:[#allocation5 + $0x500] sm:$0xff]
        %v574 = vld [vmem:[#allocation5 + $0x508] sm:$0xff]
        %v575 = vld [vmem:[#allocation5 + $0x510] sm:$0xff]
        %v576 = vld [vmem:[#allocation5 + $0x518] sm:$0xff]
        %v577 = vld [vmem:[#allocation5 + $0x520] sm:$0xff]
        %v578 = vld [vmem:[#allocation5 + $0x528] sm:$0xff]
        %v579 = vld [vmem:[#allocation5 + $0x530] sm:$0xff]
        %v580 = vld [vmem:[#allocation5 + $0x538] sm:$0xff]
        %v581 = vld [vmem:[#allocation5 + $0x540] sm:$0xff]
        %v582 = vld [vmem:[#allocation5 + $0x548] sm:$0xff]
        %v583 = vld [vmem:[#allocation5 + $0x550] sm:$0xff]
        %v584 = vld [vmem:[#allocation5 + $0x558] sm:$0xff]
        %v585 = vld [vmem:[#allocation5 + $0x560] sm:$0xff]
        %v586 = vld [vmem:[#allocation5 + $0x568] sm:$0xff]
        %v587 = vld [vmem:[#allocation5 + $0x570] sm:$0xff]
        %v588 = vld [vmem:[#allocation5 + $0x578] sm:$0xff]
        %v589 = vld [vmem:[#allocation5 + $0x580] sm:$0xff]
        %v590 = vld [vmem:[#allocation5 + $0x588] sm:$0xff]
        %v591 = vld [vmem:[#allocation5 + $0x590] sm:$0xff]
        %v592 = vld [vmem:[#allocation5 + $0x598] sm:$0xff]
        %v593 = vld [vmem:[#allocation5 + $0x5a0] sm:$0xff]
        %v594 = vld [vmem:[#allocation5 + $0x5a8] sm:$0xff]
        %v595 = vld [vmem:[#allocation5 + $0x5b0] sm:$0xff]
        %v596 = vld [vmem:[#allocation5 + $0x5b8] sm:$0xff]
        %v597 = vld [vmem:[#allocation5 + $0x5c0] sm:$0xff]
        %v598 = vld [vmem:[#allocation5 + $0x5c8] sm:$0xff]
        %v599 = vld [vmem:[#allocation5 + $0x5d0] sm:$0xff]
        %v600 = vld [vmem:[#allocation5 + $0x5d8] sm:$0xff]
        %v601 = vld [vmem:[#allocation5 + $0x5e0] sm:$0xff]
        %v602 = vld [vmem:[#allocation5 + $0x5e8] sm:$0xff]
        %v603 = vld [vmem:[#allocation5 + $0x5f0] sm:$0xff]
        %v604 = vld [vmem:[#allocation5 + $0x5f8] sm:$0xff]
        %v605 = vld [vmem:[#allocation5 + $0x600] sm:$0xff]
        %v606 = vld [vmem:[#allocation5 + $0x608] sm:$0xff]
        %v607 = vld [vmem:[#allocation5 + $0x610] sm:$0xff]
        %v608 = vld [vmem:[#allocation5 + $0x618] sm:$0xff]
        %v609 = vld [vmem:[#allocation5 + $0x620] sm:$0xff]
        %v610 = vld [vmem:[#allocation5 + $0x628] sm:$0xff]
        %v611 = vld [vmem:[#allocation5 + $0x630] sm:$0xff]
        %v612 = vld [vmem:[#allocation5 + $0x638] sm:$0xff]
        %v613 = vld [vmem:[#allocation5 + $0x640] sm:$0xff]
        %v614 = vld [vmem:[#allocation5 + $0x648] sm:$0xff]
        %v615 = vld [vmem:[#allocation5 + $0x650] sm:$0xff]
        %v616 = vld [vmem:[#allocation5 + $0x658] sm:$0xff]
        %v617 = vld [vmem:[#allocation5 + $0x660] sm:$0xff]
        %v618 = vld [vmem:[#allocation5 + $0x668] sm:$0xff]
        %v619 = vld [vmem:[#allocation5 + $0x670] sm:$0xff]
        %v620 = vld [vmem:[#allocation5 + $0x678] sm:$0xff]
        %v621 = vld [vmem:[#allocation5 + $0x680] sm:$0xff]
        %v622 = vld [vmem:[#allocation5 + $0x688] sm:$0xff]
        %v623 = vld [vmem:[#allocation5 + $0x690] sm:$0xff]
        %v624 = vld [vmem:[#allocation5 + $0x698] sm:$0xff]
        %v625 = vld [vmem:[#allocation5 + $0x6a0] sm:$0xff]
        %v626 = vld [vmem:[#allocation5 + $0x6a8] sm:$0xff]
        %v627 = vld [vmem:[#allocation5 + $0x6b0] sm:$0xff]
        %v628 = vld [vmem:[#allocation5 + $0x6b8] sm:$0xff]
        %v629 = vld [vmem:[#allocation5 + $0x6c0] sm:$0xff]
        %v630 = vld [vmem:[#allocation5 + $0x6c8] sm:$0xff]
        %v631 = vld [vmem:[#allocation5 + $0x6d0] sm:$0xff]
        %v632 = vld [vmem:[#allocation5 + $0x6d8] sm:$0xff]
        %v633 = vld [vmem:[#allocation5 + $0x6e0] sm:$0xff]
        %v634 = vld [vmem:[#allocation5 + $0x6e8] sm:$0xff]
        %v635 = vld [vmem:[#allocation5 + $0x6f0] sm:$0xff]
        %v636 = vld [vmem:[#allocation5 + $0x6f8] sm:$0xff]
        %v637 = vld [vmem:[#allocation5 + $0x700] sm:$0xff]
        %v638 = vld [vmem:[#allocation5 + $0x708] sm:$0xff]
        %v639 = vld [vmem:[#allocation5 + $0x710] sm:$0xff]
        %v640 = vld [vmem:[#allocation5 + $0x718] sm:$0xff]
        %v641 = vld [vmem:[#allocation5 + $0x720] sm:$0xff]
        %v642 = vld [vmem:[#allocation5 + $0x728] sm:$0xff]
        %v643 = vld [vmem:[#allocation5 + $0x730] sm:$0xff]
        %v644 = vld [vmem:[#allocation5 + $0x738] sm:$0xff]
        %v645 = vld [vmem:[#allocation5 + $0x740] sm:$0xff]
        %v646 = vld [vmem:[#allocation5 + $0x748] sm:$0xff]
        %v647 = vld [vmem:[#allocation5 + $0x750] sm:$0xff]
        %v648 = vld [vmem:[#allocation5 + $0x758] sm:$0xff]
        %v649 = vld [vmem:[#allocation5 + $0x760] sm:$0xff]
        %v650 = vld [vmem:[#allocation5 + $0x768] sm:$0xff]
        %v651 = vld [vmem:[#allocation5 + $0x770] sm:$0xff]
        %v652 = vld [vmem:[#allocation5 + $0x778] sm:$0xff]
        %v653 = vld [vmem:[#allocation5 + $0x780] sm:$0xff]
        %v654 = vld [vmem:[#allocation5 + $0x788] sm:$0xff]
        %v655 = vld [vmem:[#allocation5 + $0x790] sm:$0xff]
        %v656 = vld [vmem:[#allocation5 + $0x798] sm:$0xff]
        %v657 = vld [vmem:[#allocation5 + $0x7a0] sm:$0xff]
        %v658 = vld [vmem:[#allocation5 + $0x7a8] sm:$0xff]
        %v659 = vld [vmem:[#allocation5 + $0x7b0] sm:$0xff]
        %v660 = vld [vmem:[#allocation5 + $0x7b8] sm:$0xff]
        %v661 = vld [vmem:[#allocation5 + $0x7c0] sm:$0xff]
        %v662 = vld [vmem:[#allocation5 + $0x7c8] sm:$0xff]
        %v663 = vld [vmem:[#allocation5 + $0x7d0] sm:$0xff]
        %v664 = vld [vmem:[#allocation5 + $0x7d8] sm:$0xff]
        %v665 = vld [vmem:[#allocation5 + $0x7e0] sm:$0xff]
        %v666 = vld [vmem:[#allocation5 + $0x7e8] sm:$0xff]
        %v667 = vld [vmem:[#allocation5 + $0x7f0] sm:$0xff]
        %v668 = vld [vmem:[#allocation5 + $0x7f8] sm:$0xff]
        %v669 = vld [vmem:[#allocation7] sm:$0x3]
        %v671 = vlaneseq
        %v672 = vshrl.u32 %v671, 7
        %v673 = vsub.s32 0, %v672
        %v674 = vrot.slane %v669, %v673
        %v675 = vlaneseq
        %v676 = vshrl.u32 %v675, 7
        %v677 = vsub.s32 1, %v676
        %v678 = vrot.slane %v669, %v677
        %681 = vmatprep.subr.mxu0 %v414
        %682 = vmatpush1.msra.mxu0 %v413
        %683 = vmatprep.subr.mxu0 %v416
        %684 = vmatpush1.msra.mxu0 %v415
        %685 = vmatprep.subr.mxu0 %v418
        %686 = vmatpush1.msra.mxu0 %v417
        %687 = vmatprep.subr.mxu0 %v420
        %688 = vmatpush1.msra.mxu0 %v419
        %689 = vmatprep.subr.mxu0 %v422
        %690 = vmatpush1.msra.mxu0 %v421
        %691 = vmatprep.subr.mxu0 %v424
        %692 = vmatpush1.msra.mxu0 %v423
        %693 = vmatprep.subr.mxu0 %v426
        %694 = vmatpush1.msra.mxu0 %v425
        %695 = vmatprep.subr.mxu0 %v428
        %696 = vmatpush1.msra.mxu0 %v427
        %697 = vmatprep.subr.mxu0 %v430
        %698 = vmatpush1.msra.mxu0 %v429
        %699 = vmatprep.subr.mxu0 %v432
        %700 = vmatpush1.msra.mxu0 %v431
        %701 = vmatprep.subr.mxu0 %v434
        %702 = vmatpush1.msra.mxu0 %v433
        %703 = vmatprep.subr.mxu0 %v436
        %704 = vmatpush1.msra.mxu0 %v435
        %705 = vmatprep.subr.mxu0 %v438
        %706 = vmatpush1.msra.mxu0 %v437
        %707 = vmatprep.subr.mxu0 %v440
        %708 = vmatpush1.msra.mxu0 %v439
        %709 = vmatprep.subr.mxu0 %v442
        %710 = vmatpush1.msra.mxu0 %v441
        %711 = vmatprep.subr.mxu0 %v444
        %712 = vmatpush1.msra.mxu0 %v443
        %713 = vmatprep.subr.mxu0 %v446
        %714 = vmatpush1.msra.mxu0 %v445
        %715 = vmatprep.subr.mxu0 %v448
        %716 = vmatpush1.msra.mxu0 %v447
        %717 = vmatprep.subr.mxu0 %v450
        %718 = vmatpush1.msra.mxu0 %v449
        %719 = vmatprep.subr.mxu0 %v452
        %720 = vmatpush1.msra.mxu0 %v451
        %721 = vmatprep.subr.mxu0 %v454
        %722 = vmatpush1.msra.mxu0 %v453
        %723 = vmatprep.subr.mxu0 %v456
        %724 = vmatpush1.msra.mxu0 %v455
        %725 = vmatprep.subr.mxu0 %v458
        %726 = vmatpush1.msra.mxu0 %v457
        %727 = vmatprep.subr.mxu0 %v460
        %728 = vmatpush1.msra.mxu0 %v459
        %729 = vmatprep.subr.mxu0 %v462
        %730 = vmatpush1.msra.mxu0 %v461
        %731 = vmatprep.subr.mxu0 %v464
        %732 = vmatpush1.msra.mxu0 %v463
        %733 = vmatprep.subr.mxu0 %v466
        %734 = vmatpush1.msra.mxu0 %v465
        %735 = vmatprep.subr.mxu0 %v468
        %736 = vmatpush1.msra.mxu0 %v467
        %737 = vmatprep.subr.mxu0 %v470
        %738 = vmatpush1.msra.mxu0 %v469
        %739 = vmatprep.subr.mxu0 %v472
        %740 = vmatpush1.msra.mxu0 %v471
        %741 = vmatprep.subr.mxu0 %v474
        %742 = vmatpush1.msra.mxu0 %v473
        %743 = vmatprep.subr.mxu0 %v476
        %744 = vmatpush1.msra.mxu0 %v475
        %745 = vmatprep.mubr.f32.mxu0 %v286
        %746 = vmatmul.mubr.f32.gmra.mrb[0].mxu0 %v285
        %v747 = vpop.f32.mrb[0].mxu0
        %v748 = vadd.f32 %v674, %v747
        %v749 = vpop.f32.mrb[0].mxu0
        %v750 = vadd.f32 %v678, %v749
        %751 = vmatprep.mubr.f32.mxu0 %v294
        %752 = vmatmul.mubr.f32.gmra.mrb[0].mxu0 %v293
        %v753 = vpop.f32.mrb[0].mxu0
        %v754 = vadd.f32 %v674, %v753
        %v755 = vpop.f32.mrb[0].mxu0
        %v756 = vadd.f32 %v678, %v755
        %757 = vmatprep.mubr.f32.mxu0 %v302
        %758 = vmatmul.mubr.f32.gmra.mrb[0].mxu0 %v301
        %v759 = vpop.f32.mrb[0].mxu0
        %v760 = vadd.f32 %v674, %v759
        %v761 = vpop.f32.mrb[0].mxu0
        %v762 = vadd.f32 %v678, %v761
        %763 = vmatprep.mubr.f32.mxu0 %v310
        %764 = vmatmul.mubr.f32.gmra.mrb[0].mxu0 %v309
        %v765 = vpop.f32.mrb[0].mxu0
        %v766 = vadd.f32 %v674, %v765
        %v767 = vpop.f32.mrb[0].mxu0
        %v768 = vadd.f32 %v678, %v767
        %769 = vmatprep.mubr.f32.mxu0 %v318
        %770 = vmatmul.mubr.f32.gmra.mrb[0].mxu0 %v317
        %v771 = vpop.f32.mrb[0].mxu0
        %v772 = vadd.f32 %v674, %v771
        %v773 = vpop.f32.mrb[0].mxu0
        %v774 = vadd.f32 %v678, %v773
        %775 = vmatprep.mubr.f32.mxu0 %v326
        %776 = vmatmul.mubr.f32.gmra.mrb[0].mxu0 %v325
        %v777 = vpop.f32.mrb[0].mxu0
        %v778 = vadd.f32 %v674, %v777
        %v779 = vpop.f32.mrb[0].mxu0
        %v780 = vadd.f32 %v678, %v779
        %781 = vmatprep.mubr.f32.mxu0 %v334
        %782 = vmatmul.mubr.f32.gmra.mrb[0].mxu0 %v333
        %v783 = vpop.f32.mrb[0].mxu0
        %v784 = vadd.f32 %v674, %v783
        %v785 = vpop.f32.mrb[0].mxu0
        %v786 = vadd.f32 %v678, %v785
        %787 = vmatprep.mubr.f32.mxu0 %v342
        %788 = vmatmul.mubr.f32.gmra.mrb[0].mxu0 %v341
        %v789 = vpop.f32.mrb[0].mxu0
        %v790 = vadd.f32 %v674, %v789
        %v791 = vpop.f32.mrb[0].mxu0
        %v792 = vadd.f32 %v678, %v791
        %793 = vmatprep.mubr.f32.mxu0 %v350
        %794 = vmatmul.mubr.f32.gmra.mrb[0].mxu0 %v349
        %v795 = vpop.f32.mrb[0].mxu0
        %v796 = vadd.f32 %v674, %v795
        %v797 = vpop.f32.mrb[0].mxu0
        %v798 = vadd.f32 %v678, %v797
        %799 = vmatprep.mubr.f32.mxu0 %v358
        %800 = vmatmul.mubr.f32.gmra.mrb[0].mxu0 %v357
        %v801 = vpop.f32.mrb[0].mxu0
        %v802 = vadd.f32 %v674, %v801
        %v803 = vpop.f32.mrb[0].mxu0
        %v804 = vadd.f32 %v678, %v803
        %805 = vmatprep.mubr.f32.mxu0 %v366
        %806 = vmatmul.mubr.f32.gmra.mrb[0].mxu0 %v365
        %v807 = vpop.f32.mrb[0].mxu0
        %v808 = vadd.f32 %v674, %v807
        %v809 = vpop.f32.mrb[0].mxu0
        %v810 = vadd.f32 %v678, %v809
        %811 = vmatprep.mubr.f32.mxu0 %v374
        %812 = vmatmul.mubr.f32.gmra.mrb[0].mxu0 %v373
        %v813 = vpop.f32.mrb[0].mxu0
        %v814 = vadd.f32 %v674, %v813
        %v815 = vpop.f32.mrb[0].mxu0
        %v816 = vadd.f32 %v678, %v815
        %817 = vmatprep.mubr.f32.mxu0 %v382
        %818 = vmatmul.mubr.f32.gmra.mrb[0].mxu0 %v381
        %v819 = vpop.f32.mrb[0].mxu0
        %v820 = vadd.f32 %v674, %v819
        %v821 = vpop.f32.mrb[0].mxu0
        %v822 = vadd.f32 %v678, %v821
        %823 = vmatprep.mubr.f32.mxu0 %v390
        %824 = vmatmul.mubr.f32.gmra.mrb[0].mxu0 %v389
        %v825 = vpop.f32.mrb[0].mxu0
        %v826 = vadd.f32 %v674, %v825
        %v827 = vpop.f32.mrb[0].mxu0
        %v828 = vadd.f32 %v678, %v827
        %829 = vmatprep.mubr.f32.mxu0 %v398
        %830 = vmatmul.mubr.f32.gmra.mrb[0].mxu0 %v397
        %v831 = vpop.f32.mrb[0].mxu0
        %v832 = vadd.f32 %v674, %v831
        %v833 = vpop.f32.mrb[0].mxu0
        %v834 = vadd.f32 %v678, %v833
        %835 = vmatprep.mubr.f32.mxu0 %v406
        %836 = vmatmul.mubr.f32.gmra.mrb[0].mxu0 %v405
        %v837 = vpop.f32.mrb[0].mxu0
        %v838 = vadd.f32 %v674, %v837
        %v839 = vpop.f32.mrb[0].mxu0
        %v840 = vadd.f32 %v678, %v839
        %841 = vdwg.mxu0
        %842 = vmatprep.subr.mxu0 %v478
        %843 = vmatpush1.msra.mxu0 %v477
        %844 = vmatprep.subr.mxu0 %v480
        %845 = vmatpush1.msra.mxu0 %v479
        %846 = vmatprep.subr.mxu0 %v482
        %847 = vmatpush1.msra.mxu0 %v481
        %848 = vmatprep.subr.mxu0 %v484
        %849 = vmatpush1.msra.mxu0 %v483
        %850 = vmatprep.subr.mxu0 %v486
        %851 = vmatpush1.msra.mxu0 %v485
        %852 = vmatprep.subr.mxu0 %v488
        %853 = vmatpush1.msra.mxu0 %v487
        %854 = vmatprep.subr.mxu0 %v490
        %855 = vmatpush1.msra.mxu0 %v489
        %856 = vmatprep.subr.mxu0 %v492
        %857 = vmatpush1.msra.mxu0 %v491
        %858 = vmatprep.subr.mxu0 %v494
        %859 = vmatpush1.msra.mxu0 %v493
        %860 = vmatprep.subr.mxu0 %v496
        %861 = vmatpush1.msra.mxu0 %v495
        %862 = vmatprep.subr.mxu0 %v498
        %863 = vmatpush1.msra.mxu0 %v497
        %864 = vmatprep.subr.mxu0 %v500
        %865 = vmatpush1.msra.mxu0 %v499
        %866 = vmatprep.subr.mxu0 %v502
        %867 = vmatpush1.msra.mxu0 %v501
        %868 = vmatprep.subr.mxu0 %v504
        %869 = vmatpush1.msra.mxu0 %v503
        %870 = vmatprep.subr.mxu0 %v506
        %871 = vmatpush1.msra.mxu0 %v505
        %872 = vmatprep.subr.mxu0 %v508
        %873 = vmatpush1.msra.mxu0 %v507
        %874 = vmatprep.subr.mxu0 %v510
        %875 = vmatpush1.msra.mxu0 %v509
        %876 = vmatprep.subr.mxu0 %v512
        %877 = vmatpush1.msra.mxu0 %v511
        %878 = vmatprep.subr.mxu0 %v514
        %879 = vmatpush1.msra.mxu0 %v513
        %880 = vmatprep.subr.mxu0 %v516
        %881 = vmatpush1.msra.mxu0 %v515
        %882 = vmatprep.subr.mxu0 %v518
        %883 = vmatpush1.msra.mxu0 %v517
        %884 = vmatprep.subr.mxu0 %v520
        %885 = vmatpush1.msra.mxu0 %v519
        %886 = vmatprep.subr.mxu0 %v522
        %887 = vmatpush1.msra.mxu0 %v521
        %888 = vmatprep.subr.mxu0 %v524
        %889 = vmatpush1.msra.mxu0 %v523
        %890 = vmatprep.subr.mxu0 %v526
        %891 = vmatpush1.msra.mxu0 %v525
        %892 = vmatprep.subr.mxu0 %v528
        %893 = vmatpush1.msra.mxu0 %v527
        %894 = vmatprep.subr.mxu0 %v530
        %895 = vmatpush1.msra.mxu0 %v529
        %896 = vmatprep.subr.mxu0 %v532
        %897 = vmatpush1.msra.mxu0 %v531
        %898 = vmatprep.subr.mxu0 %v534
        %899 = vmatpush1.msra.mxu0 %v533
        %900 = vmatprep.subr.mxu0 %v536
        %901 = vmatpush1.msra.mxu0 %v535
        %902 = vmatprep.subr.mxu0 %v538
        %903 = vmatpush1.msra.mxu0 %v537
        %904 = vmatprep.subr.mxu0 %v540
        %905 = vmatpush1.msra.mxu0 %v539
        %906 = vmatprep.mubr.f32.mxu0 %v288
        %907 = vmatmul.mubr.f32.gmra.mrb[0].mxu0 %v287
        %v908 = vpop.f32.mrb[0].mxu0
        %v909 = vadd.f32 %v748, %v908
        %v910 = vpop.f32.mrb[0].mxu0
        %v911 = vadd.f32 %v750, %v910
        %912 = vmatprep.mubr.f32.mxu0 %v296
        %913 = vmatmul.mubr.f32.gmra.mrb[0].mxu0 %v295
        %v914 = vpop.f32.mrb[0].mxu0
        %v915 = vadd.f32 %v754, %v914
        %v916 = vpop.f32.mrb[0].mxu0
        %v917 = vadd.f32 %v756, %v916
        %918 = vmatprep.mubr.f32.mxu0 %v304
        %919 = vmatmul.mubr.f32.gmra.mrb[0].mxu0 %v303
        %v920 = vpop.f32.mrb[0].mxu0
        %v921 = vadd.f32 %v760, %v920
        %v922 = vpop.f32.mrb[0].mxu0
        %v923 = vadd.f32 %v762, %v922
        %924 = vmatprep.mubr.f32.mxu0 %v312
        %925 = vmatmul.mubr.f32.gmra.mrb[0].mxu0 %v311
        %v926 = vpop.f32.mrb[0].mxu0
        %v927 = vadd.f32 %v766, %v926
        %v928 = vpop.f32.mrb[0].mxu0
        %v929 = vadd.f32 %v768, %v928
        %930 = vmatprep.mubr.f32.mxu0 %v320
        %931 = vmatmul.mubr.f32.gmra.mrb[0].mxu0 %v319
        %v932 = vpop.f32.mrb[0].mxu0
        %v933 = vadd.f32 %v772, %v932
        %v934 = vpop.f32.mrb[0].mxu0
        %v935 = vadd.f32 %v774, %v934
        %936 = vmatprep.mubr.f32.mxu0 %v328
        %937 = vmatmul.mubr.f32.gmra.mrb[0].mxu0 %v327
        %v938 = vpop.f32.mrb[0].mxu0
        %v939 = vadd.f32 %v778, %v938
        %v940 = vpop.f32.mrb[0].mxu0
        %v941 = vadd.f32 %v780, %v940
        %942 = vmatprep.mubr.f32.mxu0 %v336
        %943 = vmatmul.mubr.f32.gmra.mrb[0].mxu0 %v335
        %v944 = vpop.f32.mrb[0].mxu0
        %v945 = vadd.f32 %v784, %v944
        %v946 = vpop.f32.mrb[0].mxu0
        %v947 = vadd.f32 %v786, %v946
        %948 = vmatprep.mubr.f32.mxu0 %v344
        %949 = vmatmul.mubr.f32.gmra.mrb[0].mxu0 %v343
        %v950 = vpop.f32.mrb[0].mxu0
        %v951 = vadd.f32 %v790, %v950
        %v952 = vpop.f32.mrb[0].mxu0
        %v953 = vadd.f32 %v792, %v952
        %954 = vmatprep.mubr.f32.mxu0 %v352
        %955 = vmatmul.mubr.f32.gmra.mrb[0].mxu0 %v351
        %v956 = vpop.f32.mrb[0].mxu0
        %v957 = vadd.f32 %v796, %v956
        %v958 = vpop.f32.mrb[0].mxu0
        %v959 = vadd.f32 %v798, %v958
        %960 = vmatprep.mubr.f32.mxu0 %v360
        %961 = vmatmul.mubr.f32.gmra.mrb[0].mxu0 %v359
        %v962 = vpop.f32.mrb[0].mxu0
        %v963 = vadd.f32 %v802, %v962
        %v964 = vpop.f32.mrb[0].mxu0
        %v965 = vadd.f32 %v804, %v964
        %966 = vmatprep.mubr.f32.mxu0 %v368
        %967 = vmatmul.mubr.f32.gmra.mrb[0].mxu0 %v367
        %v968 = vpop.f32.mrb[0].mxu0
        %v969 = vadd.f32 %v808, %v968
        %v970 = vpop.f32.mrb[0].mxu0
        %v971 = vadd.f32 %v810, %v970
        %972 = vmatprep.mubr.f32.mxu0 %v376
        %973 = vmatmul.mubr.f32.gmra.mrb[0].mxu0 %v375
        %v974 = vpop.f32.mrb[0].mxu0
        %v975 = vadd.f32 %v814, %v974
        %v976 = vpop.f32.mrb[0].mxu0
        %v977 = vadd.f32 %v816, %v976
        %978 = vmatprep.mubr.f32.mxu0 %v384
        %979 = vmatmul.mubr.f32.gmra.mrb[0].mxu0 %v383
        %v980 = vpop.f32.mrb[0].mxu0
        %v981 = vadd.f32 %v820, %v980
        %v982 = vpop.f32.mrb[0].mxu0
        %v983 = vadd.f32 %v822, %v982
        %984 = vmatprep.mubr.f32.mxu0 %v392
        %985 = vmatmul.mubr.f32.gmra.mrb[0].mxu0 %v391
        %v986 = vpop.f32.mrb[0].mxu0
        %v987 = vadd.f32 %v826, %v986
        %v988 = vpop.f32.mrb[0].mxu0
        %v989 = vadd.f32 %v828, %v988
        %990 = vmatprep.mubr.f32.mxu0 %v400
        %991 = vmatmul.mubr.f32.gmra.mrb[0].mxu0 %v399
        %v992 = vpop.f32.mrb[0].mxu0
        %v993 = vadd.f32 %v832, %v992
        %v994 = vpop.f32.mrb[0].mxu0
        %v995 = vadd.f32 %v834, %v994
        %996 = vmatprep.mubr.f32.mxu0 %v408
        %997 = vmatmul.mubr.f32.gmra.mrb[0].mxu0 %v407
        %v998 = vpop.f32.mrb[0].mxu0
        %v999 = vadd.f32 %v838, %v998
        %v1000 = vpop.f32.mrb[0].mxu0
        %v1001 = vadd.f32 %v840, %v1000
        %1002 = vdwg.mxu0
        %1003 = vmatprep.subr.mxu0 %v542
        %1004 = vmatpush1.msra.mxu0 %v541
        %1005 = vmatprep.subr.mxu0 %v544
        %1006 = vmatpush1.msra.mxu0 %v543
        %1007 = vmatprep.subr.mxu0 %v546
        %1008 = vmatpush1.msra.mxu0 %v545
        %1009 = vmatprep.subr.mxu0 %v548
        %1010 = vmatpush1.msra.mxu0 %v547
        %1011 = vmatprep.subr.mxu0 %v550
        %1012 = vmatpush1.msra.mxu0 %v549
        %1013 = vmatprep.subr.mxu0 %v552
        %1014 = vmatpush1.msra.mxu0 %v551
        %1015 = vmatprep.subr.mxu0 %v554
        %1016 = vmatpush1.msra.mxu0 %v553
        %1017 = vmatprep.subr.mxu0 %v556
        %1018 = vmatpush1.msra.mxu0 %v555
        %1019 = vmatprep.subr.mxu0 %v558
        %1020 = vmatpush1.msra.mxu0 %v557
        %1021 = vmatprep.subr.mxu0 %v560
        %1022 = vmatpush1.msra.mxu0 %v559
        %1023 = vmatprep.subr.mxu0 %v562
        %1024 = vmatpush1.msra.mxu0 %v561
        %1025 = vmatprep.subr.mxu0 %v564
        %1026 = vmatpush1.msra.mxu0 %v563
        %1027 = vmatprep.subr.mxu0 %v566
        %1028 = vmatpush1.msra.mxu0 %v565
        %1029 = vmatprep.subr.mxu0 %v568
        %1030 = vmatpush1.msra.mxu0 %v567
        %1031 = vmatprep.subr.mxu0 %v570
        %1032 = vmatpush1.msra.mxu0 %v569
        %1033 = vmatprep.subr.mxu0 %v572
        %1034 = vmatpush1.msra.mxu0 %v571
        %1035 = vmatprep.subr.mxu0 %v574
        %1036 = vmatpush1.msra.mxu0 %v573
        %1037 = vmatprep.subr.mxu0 %v576
        %1038 = vmatpush1.msra.mxu0 %v575
        %1039 = vmatprep.subr.mxu0 %v578
        %1040 = vmatpush1.msra.mxu0 %v577
        %1041 = vmatprep.subr.mxu0 %v580
        %1042 = vmatpush1.msra.mxu0 %v579
        %1043 = vmatprep.subr.mxu0 %v582
        %1044 = vmatpush1.msra.mxu0 %v581
        %1045 = vmatprep.subr.mxu0 %v584
        %1046 = vmatpush1.msra.mxu0 %v583
        %1047 = vmatprep.subr.mxu0 %v586
        %1048 = vmatpush1.msra.mxu0 %v585
        %1049 = vmatprep.subr.mxu0 %v588
        %1050 = vmatpush1.msra.mxu0 %v587
        %1051 = vmatprep.subr.mxu0 %v590
        %1052 = vmatpush1.msra.mxu0 %v589
        %1053 = vmatprep.subr.mxu0 %v592
        %1054 = vmatpush1.msra.mxu0 %v591
        %1055 = vmatprep.subr.mxu0 %v594
        %1056 = vmatpush1.msra.mxu0 %v593
        %1057 = vmatprep.subr.mxu0 %v596
        %1058 = vmatpush1.msra.mxu0 %v595
        %1059 = vmatprep.subr.mxu0 %v598
        %1060 = vmatpush1.msra.mxu0 %v597
        %1061 = vmatprep.subr.mxu0 %v600
        %1062 = vmatpush1.msra.mxu0 %v599
        %1063 = vmatprep.subr.mxu0 %v602
        %1064 = vmatpush1.msra.mxu0 %v601
        %1065 = vmatprep.subr.mxu0 %v604
        %1066 = vmatpush1.msra.mxu0 %v603
        %1067 = vmatprep.mubr.f32.mxu0 %v290
        %1068 = vmatmul.mubr.f32.gmra.mrb[0].mxu0 %v289
        %v1069 = vpop.f32.mrb[0].mxu0
        %v1070 = vadd.f32 %v909, %v1069
        %v1071 = vpop.f32.mrb[0].mxu0
        %v1072 = vadd.f32 %v911, %v1071
        %1073 = vmatprep.mubr.f32.mxu0 %v298
        %1074 = vmatmul.mubr.f32.gmra.mrb[0].mxu0 %v297
        %v1075 = vpop.f32.mrb[0].mxu0
        %v1076 = vadd.f32 %v915, %v1075
        %v1077 = vpop.f32.mrb[0].mxu0
        %v1078 = vadd.f32 %v917, %v1077
        %1079 = vmatprep.mubr.f32.mxu0 %v306
        %1080 = vmatmul.mubr.f32.gmra.mrb[0].mxu0 %v305
        %v1081 = vpop.f32.mrb[0].mxu0
        %v1082 = vadd.f32 %v921, %v1081
        %v1083 = vpop.f32.mrb[0].mxu0
        %v1084 = vadd.f32 %v923, %v1083
        %1085 = vmatprep.mubr.f32.mxu0 %v314
        %1086 = vmatmul.mubr.f32.gmra.mrb[0].mxu0 %v313
        %v1087 = vpop.f32.mrb[0].mxu0
        %v1088 = vadd.f32 %v927, %v1087
        %v1089 = vpop.f32.mrb[0].mxu0
        %v1090 = vadd.f32 %v929, %v1089
        %1091 = vmatprep.mubr.f32.mxu0 %v322
        %1092 = vmatmul.mubr.f32.gmra.mrb[0].mxu0 %v321
        %v1093 = vpop.f32.mrb[0].mxu0
        %v1094 = vadd.f32 %v933, %v1093
        %v1095 = vpop.f32.mrb[0].mxu0
        %v1096 = vadd.f32 %v935, %v1095
        %1097 = vmatprep.mubr.f32.mxu0 %v330
        %1098 = vmatmul.mubr.f32.gmra.mrb[0].mxu0 %v329
        %v1099 = vpop.f32.mrb[0].mxu0
        %v1100 = vadd.f32 %v939, %v1099
        %v1101 = vpop.f32.mrb[0].mxu0
        %v1102 = vadd.f32 %v941, %v1101
        %1103 = vmatprep.mubr.f32.mxu0 %v338
        %1104 = vmatmul.mubr.f32.gmra.mrb[0].mxu0 %v337
        %v1105 = vpop.f32.mrb[0].mxu0
        %v1106 = vadd.f32 %v945, %v1105
        %v1107 = vpop.f32.mrb[0].mxu0
        %v1108 = vadd.f32 %v947, %v1107
        %1109 = vmatprep.mubr.f32.mxu0 %v346
        %1110 = vmatmul.mubr.f32.gmra.mrb[0].mxu0 %v345
        %v1111 = vpop.f32.mrb[0].mxu0
        %v1112 = vadd.f32 %v951, %v1111
        %v1113 = vpop.f32.mrb[0].mxu0
        %v1114 = vadd.f32 %v953, %v1113
        %1115 = vmatprep.mubr.f32.mxu0 %v354
        %1116 = vmatmul.mubr.f32.gmra.mrb[0].mxu0 %v353
        %v1117 = vpop.f32.mrb[0].mxu0
        %v1118 = vadd.f32 %v957, %v1117
        %v1119 = vpop.f32.mrb[0].mxu0
        %v1120 = vadd.f32 %v959, %v1119
        %1121 = vmatprep.mubr.f32.mxu0 %v362
        %1122 = vmatmul.mubr.f32.gmra.mrb[0].mxu0 %v361
        %v1123 = vpop.f32.mrb[0].mxu0
        %v1124 = vadd.f32 %v963, %v1123
        %v1125 = vpop.f32.mrb[0].mxu0
        %v1126 = vadd.f32 %v965, %v1125
        %1127 = vmatprep.mubr.f32.mxu0 %v370
        %1128 = vmatmul.mubr.f32.gmra.mrb[0].mxu0 %v369
        %v1129 = vpop.f32.mrb[0].mxu0
        %v1130 = vadd.f32 %v969, %v1129
        %v1131 = vpop.f32.mrb[0].mxu0
        %v1132 = vadd.f32 %v971, %v1131
        %1133 = vmatprep.mubr.f32.mxu0 %v378
        %1134 = vmatmul.mubr.f32.gmra.mrb[0].mxu0 %v377
        %v1135 = vpop.f32.mrb[0].mxu0
        %v1136 = vadd.f32 %v975, %v1135
        %v1137 = vpop.f32.mrb[0].mxu0
        %v1138 = vadd.f32 %v977, %v1137
        %1139 = vmatprep.mubr.f32.mxu0 %v386
        %1140 = vmatmul.mubr.f32.gmra.mrb[0].mxu0 %v385
        %v1141 = vpop.f32.mrb[0].mxu0
        %v1142 = vadd.f32 %v981, %v1141
        %v1143 = vpop.f32.mrb[0].mxu0
        %v1144 = vadd.f32 %v983, %v1143
        %1145 = vmatprep.mubr.f32.mxu0 %v394
        %1146 = vmatmul.mubr.f32.gmra.mrb[0].mxu0 %v393
        %v1147 = vpop.f32.mrb[0].mxu0
        %v1148 = vadd.f32 %v987, %v1147
        %v1149 = vpop.f32.mrb[0].mxu0
        %v1150 = vadd.f32 %v989, %v1149
        %1151 = vmatprep.mubr.f32.mxu0 %v402
        %1152 = vmatmul.mubr.f32.gmra.mrb[0].mxu0 %v401
        %v1153 = vpop.f32.mrb[0].mxu0
        %v1154 = vadd.f32 %v993, %v1153
        %v1155 = vpop.f32.mrb[0].mxu0
        %v1156 = vadd.f32 %v995, %v1155
        %1157 = vmatprep.mubr.f32.mxu0 %v410
        %1158 = vmatmul.mubr.f32.gmra.mrb[0].mxu0 %v409
        %v1159 = vpop.f32.mrb[0].mxu0
        %v1160 = vadd.f32 %v999, %v1159
        %v1161 = vpop.f32.mrb[0].mxu0
        %v1162 = vadd.f32 %v1001, %v1161
        %1163 = vdwg.mxu0
        %1164 = vmatprep.subr.mxu0 %v606
        %1165 = vmatpush1.msra.mxu0 %v605
        %1166 = vmatprep.subr.mxu0 %v608
        %1167 = vmatpush1.msra.mxu0 %v607
        %1168 = vmatprep.subr.mxu0 %v610
        %1169 = vmatpush1.msra.mxu0 %v609
        %1170 = vmatprep.subr.mxu0 %v612
        %1171 = vmatpush1.msra.mxu0 %v611
        %1172 = vmatprep.subr.mxu0 %v614
        %1173 = vmatpush1.msra.mxu0 %v613
        %1174 = vmatprep.subr.mxu0 %v616
        %1175 = vmatpush1.msra.mxu0 %v615
        %1176 = vmatprep.subr.mxu0 %v618
        %1177 = vmatpush1.msra.mxu0 %v617
        %1178 = vmatprep.subr.mxu0 %v620
        %1179 = vmatpush1.msra.mxu0 %v619
        %1180 = vmatprep.subr.mxu0 %v622
        %1181 = vmatpush1.msra.mxu0 %v621
        %1182 = vmatprep.subr.mxu0 %v624
        %1183 = vmatpush1.msra.mxu0 %v623
        %1184 = vmatprep.subr.mxu0 %v626
        %1185 = vmatpush1.msra.mxu0 %v625
        %1186 = vmatprep.subr.mxu0 %v628
        %1187 = vmatpush1.msra.mxu0 %v627
        %1188 = vmatprep.subr.mxu0 %v630
        %1189 = vmatpush1.msra.mxu0 %v629
        %1190 = vmatprep.subr.mxu0 %v632
        %1191 = vmatpush1.msra.mxu0 %v631
        %1192 = vmatprep.subr.mxu0 %v634
        %1193 = vmatpush1.msra.mxu0 %v633
        %1194 = vmatprep.subr.mxu0 %v636
        %1195 = vmatpush1.msra.mxu0 %v635
        %1196 = vmatprep.subr.mxu0 %v638
        %1197 = vmatpush1.msra.mxu0 %v637
        %1198 = vmatprep.subr.mxu0 %v640
        %1199 = vmatpush1.msra.mxu0 %v639
        %1200 = vmatprep.subr.mxu0 %v642
        %1201 = vmatpush1.msra.mxu0 %v641
        %1202 = vmatprep.subr.mxu0 %v644
        %1203 = vmatpush1.msra.mxu0 %v643
        %1204 = vmatprep.subr.mxu0 %v646
        %1205 = vmatpush1.msra.mxu0 %v645
        %1206 = vmatprep.subr.mxu0 %v648
        %1207 = vmatpush1.msra.mxu0 %v647
        %1208 = vmatprep.subr.mxu0 %v650
        %1209 = vmatpush1.msra.mxu0 %v649
        %1210 = vmatprep.subr.mxu0 %v652
        %1211 = vmatpush1.msra.mxu0 %v651
        %1212 = vmatprep.subr.mxu0 %v654
        %1213 = vmatpush1.msra.mxu0 %v653
        %1214 = vmatprep.subr.mxu0 %v656
        %1215 = vmatpush1.msra.mxu0 %v655
        %1216 = vmatprep.subr.mxu0 %v658
        %1217 = vmatpush1.msra.mxu0 %v657
        %1218 = vmatprep.subr.mxu0 %v660
        %1219 = vmatpush1.msra.mxu0 %v659
        %1220 = vmatprep.subr.mxu0 %v662
        %1221 = vmatpush1.msra.mxu0 %v661
        %1222 = vmatprep.subr.mxu0 %v664
        %1223 = vmatpush1.msra.mxu0 %v663
        %1224 = vmatprep.subr.mxu0 %v666
        %1225 = vmatpush1.msra.mxu0 %v665
        %1226 = vmatprep.subr.mxu0 %v668
        %1227 = vmatpush1.msra.mxu0 %v667
        %1228 = vmatprep.mubr.f32.mxu0 %v292
        %1229 = vmatmul.mubr.f32.gmra.mrb[0].mxu0 %v291
        %v1230 = vpop.f32.mrb[0].mxu0
        %v1231 = vadd.f32 %v1070, %v1230
        %v1232 = vpop.f32.mrb[0].mxu0
        %v1233 = vadd.f32 %v1072, %v1232
        %1234 = vmatprep.mubr.f32.mxu0 %v300
        %1235 = vmatmul.mubr.f32.gmra.mrb[0].mxu0 %v299
        %v1236 = vpop.f32.mrb[0].mxu0
        %v1237 = vadd.f32 %v1076, %v1236
        %v1238 = vpop.f32.mrb[0].mxu0
        %v1239 = vadd.f32 %v1078, %v1238
        %1240 = vmatprep.mubr.f32.mxu0 %v308
        %1241 = vmatmul.mubr.f32.gmra.mrb[0].mxu0 %v307
        %v1242 = vpop.f32.mrb[0].mxu0
        %v1243 = vadd.f32 %v1082, %v1242
        %v1244 = vpop.f32.mrb[0].mxu0
        %v1245 = vadd.f32 %v1084, %v1244
        %1246 = vmatprep.mubr.f32.mxu0 %v316
        %1247 = vmatmul.mubr.f32.gmra.mrb[0].mxu0 %v315
        %v1248 = vpop.f32.mrb[0].mxu0
        %v1249 = vadd.f32 %v1088, %v1248
        %v1250 = vpop.f32.mrb[0].mxu0
        %v1251 = vadd.f32 %v1090, %v1250
        %1252 = vmatprep.mubr.f32.mxu0 %v324
        %1253 = vmatmul.mubr.f32.gmra.mrb[0].mxu0 %v323
        %v1254 = vpop.f32.mrb[0].mxu0
        %v1255 = vadd.f32 %v1094, %v1254
        %v1256 = vpop.f32.mrb[0].mxu0
        %v1257 = vadd.f32 %v1096, %v1256
        %1258 = vmatprep.mubr.f32.mxu0 %v332
        %1259 = vmatmul.mubr.f32.gmra.mrb[0].mxu0 %v331
        %v1260 = vpop.f32.mrb[0].mxu0
        %v1261 = vadd.f32 %v1100, %v1260
        %v1262 = vpop.f32.mrb[0].mxu0
        %v1263 = vadd.f32 %v1102, %v1262
        %1264 = vmatprep.mubr.f32.mxu0 %v340
        %1265 = vmatmul.mubr.f32.gmra.mrb[0].mxu0 %v339
        %v1266 = vpop.f32.mrb[0].mxu0
        %v1267 = vadd.f32 %v1106, %v1266
        %v1268 = vpop.f32.mrb[0].mxu0
        %v1269 = vadd.f32 %v1108, %v1268
        %1270 = vmatprep.mubr.f32.mxu0 %v348
        %1271 = vmatmul.mubr.f32.gmra.mrb[0].mxu0 %v347
        %v1272 = vpop.f32.mrb[0].mxu0
        %v1273 = vadd.f32 %v1112, %v1272
        %v1274 = vpop.f32.mrb[0].mxu0
        %v1275 = vadd.f32 %v1114, %v1274
        %1276 = vmatprep.mubr.f32.mxu0 %v356
        %1277 = vmatmul.mubr.f32.gmra.mrb[0].mxu0 %v355
        %v1278 = vpop.f32.mrb[0].mxu0
        %v1279 = vadd.f32 %v1118, %v1278
        %v1280 = vpop.f32.mrb[0].mxu0
        %v1281 = vadd.f32 %v1120, %v1280
        %1282 = vmatprep.mubr.f32.mxu0 %v364
        %1283 = vmatmul.mubr.f32.gmra.mrb[0].mxu0 %v363
        %v1284 = vpop.f32.mrb[0].mxu0
        %v1285 = vadd.f32 %v1124, %v1284
        %v1286 = vpop.f32.mrb[0].mxu0
        %v1287 = vadd.f32 %v1126, %v1286
        %1288 = vmatprep.mubr.f32.mxu0 %v372
        %1289 = vmatmul.mubr.f32.gmra.mrb[0].mxu0 %v371
        %v1290 = vpop.f32.mrb[0].mxu0
        %v1291 = vadd.f32 %v1130, %v1290
        %v1292 = vpop.f32.mrb[0].mxu0
        %v1293 = vadd.f32 %v1132, %v1292
        %1294 = vmatprep.mubr.f32.mxu0 %v380
        %1295 = vmatmul.mubr.f32.gmra.mrb[0].mxu0 %v379
        %v1296 = vpop.f32.mrb[0].mxu0
        %v1297 = vadd.f32 %v1136, %v1296
        %v1298 = vpop.f32.mrb[0].mxu0
        %v1299 = vadd.f32 %v1138, %v1298
        %1300 = vmatprep.mubr.f32.mxu0 %v388
        %1301 = vmatmul.mubr.f32.gmra.mrb[0].mxu0 %v387
        %v1302 = vpop.f32.mrb[0].mxu0
        %v1303 = vadd.f32 %v1142, %v1302
        %v1304 = vpop.f32.mrb[0].mxu0
        %v1305 = vadd.f32 %v1144, %v1304
        %1306 = vmatprep.mubr.f32.mxu0 %v396
        %1307 = vmatmul.mubr.f32.gmra.mrb[0].mxu0 %v395
        %v1308 = vpop.f32.mrb[0].mxu0
        %v1309 = vadd.f32 %v1148, %v1308
        %v1310 = vpop.f32.mrb[0].mxu0
        %v1311 = vadd.f32 %v1150, %v1310
        %1312 = vmatprep.mubr.f32.mxu0 %v404
        %1313 = vmatmul.mubr.f32.gmra.mrb[0].mxu0 %v403
        %v1314 = vpop.f32.mrb[0].mxu0
        %v1315 = vadd.f32 %v1154, %v1314
        %v1316 = vpop.f32.mrb[0].mxu0
        %v1317 = vadd.f32 %v1156, %v1316
        %1318 = vmatprep.mubr.f32.mxu0 %v412
        %1319 = vmatmul.mubr.f32.gmra.mrb[0].mxu0 %v411
        %v1320 = vpop.f32.mrb[0].mxu0
        %v1321 = vadd.f32 %v1160, %v1320
        %v1322 = vpop.f32.mrb[0].mxu0
        %v1323 = vadd.f32 %v1162, %v1322
        %1324 = vdwg.mxu0
        %v1325 = vtanh.pop %v1231
        %v1326 = vtanh.pop %v1233
        %v1327 = vtanh.pop %v1237
        %v1328 = vtanh.pop %v1239
        %v1329 = vtanh.pop %v1243
        %v1330 = vtanh.pop %v1245
        %v1331 = vtanh.pop %v1249
        %v1332 = vtanh.pop %v1251
        %v1333 = vtanh.pop %v1255
        %v1334 = vtanh.pop %v1257
        %v1335 = vtanh.pop %v1261
        %v1336 = vtanh.pop %v1263
        %v1337 = vtanh.pop %v1267
        %v1338 = vtanh.pop %v1269
        %v1339 = vtanh.pop %v1273
        %v1340 = vtanh.pop %v1275
        %v1341 = vtanh.pop %v1279
        %v1342 = vtanh.pop %v1281
        %v1343 = vtanh.pop %v1285
        %v1344 = vtanh.pop %v1287
        %v1345 = vtanh.pop %v1291
        %v1346 = vtanh.pop %v1293
        %v1347 = vtanh.pop %v1297
        %v1348 = vtanh.pop %v1299
        %v1349 = vtanh.pop %v1303
        %v1350 = vtanh.pop %v1305
        %v1351 = vtanh.pop %v1309
        %v1352 = vtanh.pop %v1311
        %v1353 = vtanh.pop %v1315
        %v1354 = vtanh.pop %v1317
        %v1355 = vtanh.pop %v1321
        %v1356 = vtanh.pop %v1323
        %v1357 = vld [vmem:[#allocation8] sm:$0xff]
        %v1358 = vld [vmem:[#allocation8 + $0x8] sm:$0xff]
        %v1359 = vld [vmem:[%s4] sm:$0xff]
        %1361 = vset.pattern.permute.xlu0 0
        %1362 = vperm.xlu0 %1361, %v1359
        %v1363 = vpop.permute.xlu0 %1362
        %1365 = vmatprep.subr.mxu0 %v1326
        %1366 = vmatpush1.xpose.msra.mxu0 %v1325
        %1367 = vmatprep.subr.mxu0 %v1328
        %1368 = vmatpush1.xpose.msra.mxu0 %v1327
        %1369 = vmatprep.subr.mxu0 %v1330
        %1370 = vmatpush1.xpose.msra.mxu0 %v1329
        %1371 = vmatprep.subr.mxu0 %v1332
        %1372 = vmatpush1.xpose.msra.mxu0 %v1331
        %1373 = vmatprep.subr.mxu0 %v1334
        %1374 = vmatpush1.xpose.msra.mxu0 %v1333
        %1375 = vmatprep.subr.mxu0 %v1336
        %1376 = vmatpush1.xpose.msra.mxu0 %v1335
        %1377 = vmatprep.subr.mxu0 %v1338
        %1378 = vmatpush1.xpose.msra.mxu0 %v1337
        %1379 = vmatprep.subr.mxu0 %v1340
        %1380 = vmatpush1.xpose.msra.mxu0 %v1339
        %1381 = vmatprep.subr.mxu0 %v1342
        %1382 = vmatpush1.xpose.msra.mxu0 %v1341
        %1383 = vmatprep.subr.mxu0 %v1344
        %1384 = vmatpush1.xpose.msra.mxu0 %v1343
        %1385 = vmatprep.subr.mxu0 %v1346
        %1386 = vmatpush1.xpose.msra.mxu0 %v1345
        %1387 = vmatprep.subr.mxu0 %v1348
        %1388 = vmatpush1.xpose.msra.mxu0 %v1347
        %1389 = vmatprep.subr.mxu0 %v1350
        %1390 = vmatpush1.xpose.msra.mxu0 %v1349
        %1391 = vmatprep.subr.mxu0 %v1352
        %1392 = vmatpush1.xpose.msra.mxu0 %v1351
        %1393 = vmatprep.subr.mxu0 %v1354
        %1394 = vmatpush1.xpose.msra.mxu0 %v1353
        %1395 = vmatprep.subr.mxu0 %v1356
        %1396 = vmatpush1.xpose.msra.mxu0 %v1355
        %1397 = vmatprep.subr.mxu0 0.0
        %1398 = vmatpush1.xpose.msra.mxu0 0.0
        %1399 = vmatprep.subr.mxu0 0.0
        %1400 = vmatpush1.xpose.msra.mxu0 0.0
        %1401 = vmatprep.subr.mxu0 0.0
        %1402 = vmatpush1.xpose.msra.mxu0 0.0
        %1403 = vmatprep.subr.mxu0 0.0
        %1404 = vmatpush1.xpose.msra.mxu0 0.0
        %1405 = vmatprep.subr.mxu0 0.0
        %1406 = vmatpush1.xpose.msra.mxu0 0.0
        %1407 = vmatprep.subr.mxu0 0.0
        %1408 = vmatpush1.xpose.msra.mxu0 0.0
        %1409 = vmatprep.subr.mxu0 0.0
        %1410 = vmatpush1.xpose.msra.mxu0 0.0
        %1411 = vmatprep.subr.mxu0 0.0
        %1412 = vmatpush1.xpose.msra.mxu0 0.0
        %1413 = vmatprep.subr.mxu0 0.0
        %1414 = vmatpush1.xpose.msra.mxu0 0.0
        %1415 = vmatprep.subr.mxu0 0.0
        %1416 = vmatpush1.xpose.msra.mxu0 0.0
        %1417 = vmatprep.subr.mxu0 0.0
        %1418 = vmatpush1.xpose.msra.mxu0 0.0
        %1419 = vmatprep.subr.mxu0 0.0
        %1420 = vmatpush1.xpose.msra.mxu0 0.0
        %1421 = vmatprep.subr.mxu0 0.0
        %1422 = vmatpush1.xpose.msra.mxu0 0.0
        %1423 = vmatprep.subr.mxu0 0.0
        %1424 = vmatpush1.xpose.msra.mxu0 0.0
        %1425 = vmatprep.subr.mxu0 0.0
        %1426 = vmatpush1.xpose.msra.mxu0 0.0
        %1427 = vmatprep.subr.mxu0 0.0
        %1428 = vmatpush1.xpose.msra.mxu0 0.0
        %1429 = vmatprep.mubr.f32.mxu0 %v1358
        %1430 = vmatmul.mubr.f32.gmra.mrb[0].mxu0 %v1357
        %v1431 = vpop.f32.mrb[0].mxu0
        %v1432 = vadd.f32 %v1363, %v1431
        %v1433 = vpop.f32.mrb[0].mxu0
        %1434 = vdwg.mxu0
        %1435 = vst [vmem:[%s283] sm:$0xff] %v1432
        %s1436 = sand.u32 %s142, 1
        %s1437 = scalar_lea.sflag [#allocation4], %s1436
        %s1438 = sand.u32 %s142, 1
        %s1439 = smul.addr %s1438, 8
        %s1440 = scalar_lea.vmem [#allocation10], %s1439
        // Predicated region
        $region57: #{tpu_custom_call.1} parent=39 // pred_check
          %p1441 = pneg %p152
        $region58: #{tpu_custom_call.1} parent=39 // pred_check_branch
          %1443 = sbr.rel (%p1441) target = $region60
        $region59: #{tpu_custom_call.1} parent=39 // pred_region
          %s1445 = ssub.s32 128, 128
          %1446 = vsyncadd %s1437, %s1445
          %s1447 = smul.addr %s24, 128
          %s1448 = scalar_lea.hbm %s5, %s1447
          %s1450 = sshll.u32 %s1440, 4
          %s1451 = int_to_ptr.vmem [resolvable:$true] %s1450
          %1453 = dma.vmem_to_hbm [thread:$0]  %s1451, 128, %s1448, %s1437
        $region60: #{tpu_custom_call.1} parent=39 // pred_fallthru
          _
      $region40: #{tpu_custom_call.1} parent=5 // pred_fallthru
        _
      %p1454 = scmp.le.s32.totalorder 2, %s19
      // Predicated region
      $region61: #{tpu_custom_call.1} parent=5 // pred_check
        %p1455 = pneg %p1454
      $region62: #{tpu_custom_call.1} parent=5 // pred_check_branch
        %1457 = sbr.rel (%p1455) target = $region64
      $region63: #{tpu_custom_call.1} parent=5 // pred_region
        %s1458 = ssub.s32 %s19, 2
        // Predicated region
        $region65: #{tpu_custom_call.1} parent=63 // pred_check
          %p1459 = pneg %p158
        $region66: #{tpu_custom_call.1} parent=63 // pred_check_branch
          %1461 = sbr.rel (%p1459) target = $region68
        $region67: #{tpu_custom_call.1} parent=63 // pred_region
          %s1462 = sand.u32 %s143, 1
          %s1463 = scalar_lea.sflag [#allocation4], %s1462
          %s1464 = sand.u32 %s143, 1
          %s1465 = smul.addr %s1464, 8
          %s1466 = scalar_lea.vmem [#allocation10], %s1465
          %1467 = dma.done %s1463, 128
        $region68: #{tpu_custom_call.1} parent=63 // pred_fallthru
          _
      $region64: #{tpu_custom_call.1} parent=5 // pred_fallthru
        _
    $region6: #{tpu_custom_call.1} parent=1 // loop_footer
      %s23 = sadd.s32 1, %s19
    $region7: #{tpu_custom_call.1} parent=1 // loop_footer_branch
      %18 = sbr.rel target = $region3
    $region8: #{tpu_custom_call.1} parent=1 // loop_exit
      _
    %1468 = vsyncpa [#allocation3], 1
    %s1469 = scalar_lea.sflag [#allocation3], 1
    %1470 = vsyncpa %s1469, 1
    %1471 = vsyncpa [#allocation6], 1
    %1472 = vsyncpa [#allocation9], 1
    %1473 = vsyncpa [#allocation4], 1
    %s1474 = scalar_lea.sflag [#allocation4], 1
    %1475 = vsyncpa %s1474, 1

</llo_original>
